<compile_context>
chip_gen: v7x
topology: tpu7x:2x2x1
jax: 0.10.0
libtpu: 0.0.40
codegen_flags: <defaults>
</compile_context>

<pallas_src>
import functools

import jax
import jax.numpy as jnp
from jax.experimental import pallas as pl
from jax.experimental.pallas import tpu as pltpu

_LANES = 128
_SUBLANES = 8
_PACK = _SUBLANES * _LANES          # anchor packing granularity (1024)
# Finite "never a hard negative" sentinel (bg CE loss is always >= 0).
_NEG_SENTINEL = -1e30


def _sum_all(x):
    # Full reduction kept as (1, 1) — layout Mosaic handles well.
    return jnp.sum(x, keepdims=True)


def _multibox_kernel(neg_pos_ratio, a_valid,
                     conf_ref, lab_ref, ploc_ref, gloc_ref, out_ref):
    conf = conf_ref[0].astype(jnp.float32)        # (C, 8, L) anchors packed dense
    lab = lab_ref[0]                              # (8, L) int32
    ploc = ploc_ref[0].astype(jnp.float32)        # (D, 8, L)
    gloc = gloc_ref[0].astype(jnp.float32)        # (D, 8, L)

    num_classes, n_sub, n_lane = conf.shape

    # Anchor validity: row-major packing puts padded anchors at the tail.
    ridx = jax.lax.broadcasted_iota(jnp.int32, (n_sub, n_lane), 0)
    cidx = jax.lax.broadcasted_iota(jnp.int32, (n_sub, n_lane), 1)
    valid = (ridx * n_lane + cidx) < a_valid                       # (8, L)

    pos = lab > 0                                                  # (8, L)

    # ---- log-softmax over classes (leading axis -> elementwise over planes) ----
    m = jnp.max(conf, axis=0)                                      # (8, L)
    lse = m + jnp.log(jnp.sum(jnp.exp(conf - m[None]), axis=0))    # (8, L)
    bg_loss = lse - conf[0]                   # -log_softmax[..., 0]

    # Per-anchor cross-entropy at the matched label (one-hot gather over classes).
    cls_iota = jax.lax.broadcasted_iota(jnp.int32, conf.shape, 0)
    conf_at = jnp.sum(jnp.where(cls_iota == lab[None], conf, 0.0), axis=0)
    ce = lse - conf_at                                             # (8, L)

    num_pos = _sum_all(jnp.where(pos, 1.0, 0.0))                   # (1, 1)
    num_neg = jnp.float32(neg_pos_ratio) * num_pos                 # (1, 1), exact int

    # ---- hard negative mining via exact k-th-largest radix threshold ----
    # Positives / padded anchors get a finite sentinel so they sit at the bottom.
    ml = jnp.where(jnp.logical_or(pos, jnp.logical_not(valid)),
                   _NEG_SENTINEL, bg_loss)                         # (8, L)

    # Monotone int32 key for f32 ordering, split into two biased 16-bit digits.
    bits = pltpu.bitcast(ml, jnp.int32)
    key = jnp.where(bits < 0, bits ^ 0x7FFFFFFF, bits)
    hi = ((key >> 16) & 0xFFFF) ^ 0x8000      # in [0, 65535], order-preserving
    lo = key & 0xFFFF                          # in [0, 65535]

    def count_ge(vals, t, extra=None):
        sel = vals >= t
        if extra is not None:
            sel = jnp.logical_and(sel, extra)
        return _sum_all(jnp.where(sel, 1.0, 0.0))                  # (1, 1) exact

    # Phase 1: max thi with count(hi >= thi) >= num_neg (greedy bit build).
    thi = jnp.zeros((1, 1), jnp.int32)
    for b in range(15, -1, -1):
        cand = thi | (1 << b)
        thi = jnp.where(count_ge(hi, cand) >= num_neg, cand, thi)

    in_band = hi == thi
    k2 = num_neg - _sum_all(jnp.where(hi > thi, 1.0, 0.0))

    # Phase 2: within the hi == thi band, max tlo with count(lo >= tlo) >= k2.
    tlo = jnp.zeros((1, 1), jnp.int32)
    for b in range(15, -1, -1):
        cand = tlo | (1 << b)
        tlo = jnp.where(count_ge(lo, cand, in_band) >= k2, cand, tlo)

    neg_sel = jnp.logical_or(hi > thi, jnp.logical_and(in_band, lo >= tlo))
    neg_sel = jnp.logical_and(neg_sel, num_neg >= 1.0)   # no positives -> no negatives

    mask = jnp.logical_and(jnp.logical_or(pos, neg_sel), valid)
    cls_sum = _sum_all(jnp.where(mask, ce, 0.0))                   # (1, 1)

    # ---- smooth L1 on positive anchors (beta = 1.0, reduction='sum') ----
    diff = ploc - gloc
    ad = jnp.abs(diff)
    sl1 = jnp.where(ad < 1.0, 0.5 * diff * diff, ad - 0.5)         # (D, 8, L)
    sl1_anchor = jnp.sum(sl1, axis=0)                              # (8, L)
    sl1_sum = _sum_all(jnp.where(pos, sl1_anchor, 0.0))            # (1, 1)

    # Single lane-dense output block per grid step:
    # sublane 0 = smooth-L1 sum, 1 = classification sum, 2 = num_pos.
    row = jax.lax.broadcasted_iota(jnp.int32, (_SUBLANES, _LANES), 0)
    out = jnp.where(row == 0, sl1_sum,
          jnp.where(row == 1, cls_sum,
          jnp.where(row == 2, num_pos, 0.0)))
    out_ref[0] = out


def multibox_loss(confidence, predicted_locations, gt_locations, labels,
                  neg_pos_ratio=3):
    """Returns (smooth_l1_loss / num_pos, classification_loss / num_pos)."""
    b, a, c = confidence.shape
    d = predicted_locations.shape[-1]

    a_pad = ((a + _PACK - 1) // _PACK) * _PACK
    l = a_pad // _SUBLANES

    # Single anchors-minor copy of every tensor, then a free row-major re-pack of
    # the anchor axis onto (sublane, lane) = (8, a_pad/8).  Callers that can
    # already produce anchors-minor layouts may skip these transposes.
    conf_t = jnp.transpose(confidence, (0, 2, 1))            # (B, C, A)
    ploc_t = jnp.transpose(predicted_locations, (0, 2, 1))   # (B, D, A)
    gloc_t = jnp.transpose(gt_locations, (0, 2, 1))          # (B, D, A)
    lab = labels.astype(jnp.int32)                           # (B, A)

    def pad_last(x):
        pad = a_pad - a
        if pad == 0:
            return x
        cfg = [(0, 0)] * (x.ndim - 1) + [(0, pad)]
        return jnp.pad(x, cfg)

    conf_p = pad_last(conf_t).reshape(b, c, _SUBLANES, l)
    ploc_p = pad_last(ploc_t).reshape(b, d, _SUBLANES, l)
    gloc_p = pad_last(gloc_t).reshape(b, d, _SUBLANES, l)
    lab_p = pad_last(lab).reshape(b, _SUBLANES, l)

    kernel = functools.partial(_multibox_kernel, neg_pos_ratio, a)

    out = pl.pallas_call(
        kernel,
        grid=(b,),
        in_specs=[
            pl.BlockSpec((1, c, _SUBLANES, l), lambda g: (g, 0, 0, 0)),
            pl.BlockSpec((1, _SUBLANES, l), lambda g: (g, 0, 0)),
            pl.BlockSpec((1, d, _SUBLANES, l), lambda g: (g, 0, 0, 0)),
            pl.BlockSpec((1, d, _SUBLANES, l), lambda g: (g, 0, 0, 0)),
        ],
        out_specs=pl.BlockSpec((1, _SUBLANES, _LANES), lambda g: (g, 0, 0)),
        out_shape=jax.ShapeDtypeStruct((b, _SUBLANES, _LANES), jnp.float32),
        compiler_params=pltpu.CompilerParams(
            dimension_semantics=("parallel",),
            vmem_limit_bytes=32 * 1024 * 1024,
        ),
    )(conf_p, lab_p, ploc_p, gloc_p)

    sl1_sum = jnp.sum(out[:, 0, 0])
    cls_sum = jnp.sum(out[:, 1, 0])
    num_pos = jnp.sum(out[:, 2, 0])
    # NOTE: num_pos == 0 yields inf/NaN, matching the PyTorch module's behavior.
    return sl1_sum / num_pos, cls_sum / num_pos


def multibox_loss_ref(conf, ploc, gloc, labels, neg_pos_ratio=3):
    """Pure-JAX reference mirroring the PyTorch forward."""
    B, A, C = conf.shape
    logp = jax.nn.log_softmax(conf, axis=2)
    loss = -logp[:, :, 0]
    pos = labels > 0
    num_pos_b = pos.sum(axis=1, keepdims=True)
    num_neg_b = num_pos_b * neg_pos_ratio
    ml = jnp.where(pos, -jnp.inf, loss)
    greater = (ml[:, None, :] > ml[:, :, None]).astype(jnp.int32)
    jj = jnp.arange(A)[None, None, :]
    ii = jnp.arange(A)[None, :, None]
    tie = ((ml[:, None, :] == ml[:, :, None]) & (jj < ii)).astype(jnp.int32)
    rank = (greater + tie).sum(-1)
    mask = pos | (rank < num_neg_b)
    lse = jax.nn.logsumexp(conf, axis=2)
    conf_at = jnp.take_along_axis(conf, labels[..., None].astype(jnp.int32), axis=2)[..., 0]
    ce = lse - conf_at
    cls_loss = jnp.sum(jnp.where(mask, ce, 0.0))
    diff = ploc - gloc
    ad = jnp.abs(diff)
    sl1 = jnp.where(ad < 1.0, 0.5 * diff * diff, ad - 0.5)
    sl1_sum = jnp.sum(jnp.where(pos[..., None], sl1, 0.0))
    num_pos = pos.sum()
    return sl1_sum / num_pos, cls_loss / num_pos


def _run_case(key, B, A, C, seq_len):
    D = 4 * seq_len
    k1, k2, k3, k4, k5 = jax.random.split(key, 5)
    confidence = jax.random.normal(k1, (B, A, C), dtype=jnp.float32)
    ploc = jax.random.normal(k2, (B, A, D), dtype=jnp.float32)
    gloc = jax.random.normal(k3, (B, A, D), dtype=jnp.float32)
    # ~25% positive anchors with class in [1, C), rest background (0)
    u = jax.random.uniform(k4, (B, A))
    cls_rand = jax.random.randint(k5, (B, A), 1, C)
    labels = jnp.where(u < 0.25, cls_rand, 0).astype(jnp.int32)

    out = multibox_loss(confidence, ploc, gloc, labels)
    out = jax.block_until_ready(out)
    ref = multibox_loss_ref(confidence, ploc, gloc, labels)
    assert jnp.allclose(out[0], ref[0], rtol=1e-5, atol=1e-5), (out[0], ref[0])
    assert jnp.allclose(out[1], ref[1], rtol=1e-5, atol=1e-5), (out[1], ref[1])


if __name__ == "__main__":
    key = jax.random.PRNGKey(0)
    k_a, k_b = jax.random.split(key)
    # batch=2, anchors=64, classes=8, seq_len=2 (heavy anchor padding path)
    _run_case(k_a, B=2, A=64, C=8, seq_len=2)
    # batch=3, anchors=200, classes=6, seq_len=1 (multi-step 'parallel' grid)
    _run_case(k_b, B=3, A=200, C=6, seq_len=1)
    print("KERNEL_OK")
</pallas_src>

<mosaic_0001>
module attributes {stable_mosaic.version = 11 : i64} {
  func.func @_multibox_kernel(%arg0: i32, %arg1: memref<1x8x8x128xf32, #tpu.memory_space<vmem>>, %arg2: memref<1x8x128xi32, #tpu.memory_space<vmem>>, %arg3: memref<1x8x8x128xf32, #tpu.memory_space<vmem>>, %arg4: memref<1x8x8x128xf32, #tpu.memory_space<vmem>>, %arg5: memref<1x8x128xf32, #tpu.memory_space<vmem>>) attributes {dimension_semantics = [#tpu.dimension_semantics<parallel>], iteration_bounds = array<i64: 2>, scalar_prefetch = 0 : i64, scratch_operands = 0 : i64, tpu.core_type = #tpu.core_type<tc>, window_params = [{transform_indices = @transform_0, window_bounds = array<i64: 1, 8, 8, 128>}, {transform_indices = @transform_1, window_bounds = array<i64: 1, 8, 128>}, {transform_indices = @transform_2, window_bounds = array<i64: 1, 8, 8, 128>}, {transform_indices = @transform_3, window_bounds = array<i64: 1, 8, 8, 128>}, {transform_indices = @transform_4, window_bounds = array<i64: 1, 8, 128>}]} {
    %c0 = arith.constant 0 : index
    %c0_0 = arith.constant 0 : index
    %c0_1 = arith.constant 0 : index
    %c0_2 = arith.constant 0 : index
    %0 = vector.load %arg1[%c0, %c0_0, %c0_1, %c0_2] : memref<1x8x8x128xf32, #tpu.memory_space<vmem>>, vector<1x8x8x128xf32>
    %1 = vector.shape_cast %0 : vector<1x8x8x128xf32> to vector<8x8x128xf32>
    %c0_3 = arith.constant 0 : index
    %c0_4 = arith.constant 0 : index
    %c0_5 = arith.constant 0 : index
    %2 = vector.load %arg2[%c0_3, %c0_4, %c0_5] : memref<1x8x128xi32, #tpu.memory_space<vmem>>, vector<1x8x128xi32>
    %3 = vector.shape_cast %2 : vector<1x8x128xi32> to vector<8x128xi32>
    %c0_6 = arith.constant 0 : index
    %c0_7 = arith.constant 0 : index
    %c0_8 = arith.constant 0 : index
    %c0_9 = arith.constant 0 : index
    %4 = vector.load %arg3[%c0_6, %c0_7, %c0_8, %c0_9] : memref<1x8x8x128xf32, #tpu.memory_space<vmem>>, vector<1x8x8x128xf32>
    %5 = vector.shape_cast %4 : vector<1x8x8x128xf32> to vector<8x8x128xf32>
    %c0_10 = arith.constant 0 : index
    %c0_11 = arith.constant 0 : index
    %c0_12 = arith.constant 0 : index
    %c0_13 = arith.constant 0 : index
    %6 = vector.load %arg4[%c0_10, %c0_11, %c0_12, %c0_13] : memref<1x8x8x128xf32, #tpu.memory_space<vmem>>, vector<1x8x8x128xf32>
    %7 = vector.shape_cast %6 : vector<1x8x8x128xf32> to vector<8x8x128xf32>
    %8 = tpu.iota {dimensions = array<i32: 0>} : vector<8x128xi32>
    %9 = tpu.iota {dimensions = array<i32: 1>} : vector<8x128xi32>
    %c128_i32 = arith.constant 128 : i32
    %10 = vector.broadcast %c128_i32 : i32 to vector<8x128xi32>
    %11 = arith.muli %8, %10 : vector<8x128xi32>
    %12 = arith.addi %11, %9 : vector<8x128xi32>
    %c64_i32 = arith.constant 64 : i32
    %13 = vector.broadcast %c64_i32 : i32 to vector<8x128xi32>
    %14 = arith.cmpi slt, %12, %13 : vector<8x128xi32>
    %c0_i32 = arith.constant 0 : i32
    %15 = vector.broadcast %c0_i32 : i32 to vector<8x128xi32>
    %16 = arith.cmpi sgt, %3, %15 : vector<8x128xi32>
    %cst = arith.constant dense<0xFF800000> : vector<8x128xf32>
    %17 = vector.multi_reduction <maximumf>, %1, %cst [0] : vector<8x8x128xf32> to vector<8x128xf32>
    %18 = vector.shape_cast %17 : vector<8x128xf32> to vector<1x8x128xf32>
    %19 = vector.broadcast %18 : vector<1x8x128xf32> to vector<8x8x128xf32>
    %20 = arith.subf %1, %19 : vector<8x8x128xf32>
    %21 = math.exp %20 : vector<8x8x128xf32>
    %cst_14 = arith.constant dense<0.000000e+00> : vector<8x128xf32>
    %22 = vector.multi_reduction <add>, %21, %cst_14 [0] : vector<8x8x128xf32> to vector<8x128xf32>
    %23 = math.log %22 : vector<8x128xf32>
    %24 = arith.addf %17, %23 : vector<8x128xf32>
    %25 = vector.extract_strided_slice %1 {offsets = [0, 0, 0], sizes = [1, 8, 128], strides = [1, 1, 1]} : vector<8x8x128xf32> to vector<1x8x128xf32>
    %26 = vector.shape_cast %25 : vector<1x8x128xf32> to vector<8x128xf32>
    %27 = arith.subf %24, %26 : vector<8x128xf32>
    %28 = tpu.iota {dimensions = array<i32: 0>} : vector<8x8x128xi32>
    %29 = vector.shape_cast %3 : vector<8x128xi32> to vector<1x8x128xi32>
    %30 = vector.broadcast %29 : vector<1x8x128xi32> to vector<8x8x128xi32>
    %31 = arith.cmpi eq, %28, %30 : vector<8x8x128xi32>
    %cst_15 = arith.constant 0.000000e+00 : f32
    %32 = vector.broadcast %cst_15 : f32 to vector<8x8x128xf32>
    %33 = arith.select %31, %1, %32 : vector<8x8x128xi1>, vector<8x8x128xf32>
    %cst_16 = arith.constant dense<0.000000e+00> : vector<8x128xf32>
    %34 = vector.multi_reduction <add>, %33, %cst_16 [0] : vector<8x8x128xf32> to vector<8x128xf32>
    %35 = arith.subf %24, %34 : vector<8x128xf32>
    %cst_17 = arith.constant 1.000000e+00 : f32
    %cst_18 = arith.constant 0.000000e+00 : f32
    %36 = vector.broadcast %cst_17 : f32 to vector<8x128xf32>
    %37 = vector.broadcast %cst_18 : f32 to vector<8x128xf32>
    %38 = arith.select %16, %36, %37 : vector<8x128xi1>, vector<8x128xf32>
    %39 = vector.shape_cast %38 : vector<8x128xf32> to vector<1x8x128xf32>
    %cst_19 = arith.constant dense<0.000000e+00> : vector<1xf32>
    %40 = vector.multi_reduction <add>, %39, %cst_19 [1, 2] : vector<1x8x128xf32> to vector<1xf32>
    %41 = vector.shape_cast %40 : vector<1xf32> to vector<1x1x1xf32>
    %42 = vector.extract %41[0, 0, 0] : f32 from vector<1x1x1xf32>
    %43 = vector.broadcast %42 : f32 to vector<1x1xf32>
    %cst_20 = arith.constant 3.000000e+00 : f32
    %44 = vector.broadcast %cst_20 : f32 to vector<1x1xf32>
    %45 = arith.mulf %44, %43 : vector<1x1xf32>
    %cst_21 = arith.constant dense<true> : vector<8x128xi1>
    %46 = arith.xori %14, %cst_21 : vector<8x128xi1>
    %47 = arith.ori %16, %46 : vector<8x128xi1>
    %cst_22 = arith.constant -1.000000e+30 : f32
    %48 = vector.broadcast %cst_22 : f32 to vector<8x128xf32>
    %49 = arith.select %47, %48, %27 : vector<8x128xi1>, vector<8x128xf32>
    %50 = tpu.bitcast %49 : vector<8x128xf32> -> vector<8x128xi32>
    %c0_i32_23 = arith.constant 0 : i32
    %51 = vector.broadcast %c0_i32_23 : i32 to vector<8x128xi32>
    %52 = arith.cmpi slt, %50, %51 : vector<8x128xi32>
    %c2147483647_i32 = arith.constant 2147483647 : i32
    %53 = vector.broadcast %c2147483647_i32 : i32 to vector<8x128xi32>
    %54 = arith.xori %50, %53 : vector<8x128xi32>
    %55 = arith.select %52, %54, %50 : vector<8x128xi1>, vector<8x128xi32>
    %c16_i32 = arith.constant 16 : i32
    %56 = vector.broadcast %c16_i32 : i32 to vector<8x128xi32>
    %57 = arith.shrsi %55, %56 : vector<8x128xi32>
    %c65535_i32 = arith.constant 65535 : i32
    %58 = vector.broadcast %c65535_i32 : i32 to vector<8x128xi32>
    %59 = arith.andi %57, %58 : vector<8x128xi32>
    %c32768_i32 = arith.constant 32768 : i32
    %60 = vector.broadcast %c32768_i32 : i32 to vector<8x128xi32>
    %61 = arith.xori %59, %60 : vector<8x128xi32>
    %c65535_i32_24 = arith.constant 65535 : i32
    %62 = vector.broadcast %c65535_i32_24 : i32 to vector<8x128xi32>
    %63 = arith.andi %55, %62 : vector<8x128xi32>
    %c0_i32_25 = arith.constant 0 : i32
    %64 = vector.broadcast %c0_i32_25 : i32 to vector<1x1xi32>
    %c32768_i32_26 = arith.constant 32768 : i32
    %65 = vector.broadcast %c32768_i32_26 : i32 to vector<1x1xi32>
    %66 = arith.ori %64, %65 : vector<1x1xi32>
    %67 = vector.broadcast %66 : vector<1x1xi32> to vector<8x128xi32>
    %68 = arith.cmpi sge, %61, %67 : vector<8x128xi32>
    %cst_27 = arith.constant 1.000000e+00 : f32
    %cst_28 = arith.constant 0.000000e+00 : f32
    %69 = vector.broadcast %cst_27 : f32 to vector<8x128xf32>
    %70 = vector.broadcast %cst_28 : f32 to vector<8x128xf32>
    %71 = arith.select %68, %69, %70 : vector<8x128xi1>, vector<8x128xf32>
    %72 = vector.shape_cast %71 : vector<8x128xf32> to vector<1x8x128xf32>
    %cst_29 = arith.constant dense<0.000000e+00> : vector<1xf32>
    %73 = vector.multi_reduction <add>, %72, %cst_29 [1, 2] : vector<1x8x128xf32> to vector<1xf32>
    %74 = vector.shape_cast %73 : vector<1xf32> to vector<1x1x1xf32>
    %75 = vector.extract %74[0, 0, 0] : f32 from vector<1x1x1xf32>
    %76 = vector.broadcast %75 : f32 to vector<1x1xf32>
    %77 = arith.cmpf oge, %76, %45 : vector<1x1xf32>
    %78 = arith.select %77, %66, %64 : vector<1x1xi1>, vector<1x1xi32>
    %c16384_i32 = arith.constant 16384 : i32
    %79 = vector.broadcast %c16384_i32 : i32 to vector<1x1xi32>
    %80 = arith.ori %78, %79 : vector<1x1xi32>
    %81 = vector.broadcast %80 : vector<1x1xi32> to vector<8x128xi32>
    %82 = arith.cmpi sge, %61, %81 : vector<8x128xi32>
    %cst_30 = arith.constant 1.000000e+00 : f32
    %cst_31 = arith.constant 0.000000e+00 : f32
    %83 = vector.broadcast %cst_30 : f32 to vector<8x128xf32>
    %84 = vector.broadcast %cst_31 : f32 to vector<8x128xf32>
    %85 = arith.select %82, %83, %84 : vector<8x128xi1>, vector<8x128xf32>
    %86 = vector.shape_cast %85 : vector<8x128xf32> to vector<1x8x128xf32>
    %cst_32 = arith.constant dense<0.000000e+00> : vector<1xf32>
    %87 = vector.multi_reduction <add>, %86, %cst_32 [1, 2] : vector<1x8x128xf32> to vector<1xf32>
    %88 = vector.shape_cast %87 : vector<1xf32> to vector<1x1x1xf32>
    %89 = vector.extract %88[0, 0, 0] : f32 from vector<1x1x1xf32>
    %90 = vector.broadcast %89 : f32 to vector<1x1xf32>
    %91 = arith.cmpf oge, %90, %45 : vector<1x1xf32>
    %92 = arith.select %91, %80, %78 : vector<1x1xi1>, vector<1x1xi32>
    %c8192_i32 = arith.constant 8192 : i32
    %93 = vector.broadcast %c8192_i32 : i32 to vector<1x1xi32>
    %94 = arith.ori %92, %93 : vector<1x1xi32>
    %95 = vector.broadcast %94 : vector<1x1xi32> to vector<8x128xi32>
    %96 = arith.cmpi sge, %61, %95 : vector<8x128xi32>
    %cst_33 = arith.constant 1.000000e+00 : f32
    %cst_34 = arith.constant 0.000000e+00 : f32
    %97 = vector.broadcast %cst_33 : f32 to vector<8x128xf32>
    %98 = vector.broadcast %cst_34 : f32 to vector<8x128xf32>
    %99 = arith.select %96, %97, %98 : vector<8x128xi1>, vector<8x128xf32>
    %100 = vector.shape_cast %99 : vector<8x128xf32> to vector<1x8x128xf32>
    %cst_35 = arith.constant dense<0.000000e+00> : vector<1xf32>
    %101 = vector.multi_reduction <add>, %100, %cst_35 [1, 2] : vector<1x8x128xf32> to vector<1xf32>
    %102 = vector.shape_cast %101 : vector<1xf32> to vector<1x1x1xf32>
    %103 = vector.extract %102[0, 0, 0] : f32 from vector<1x1x1xf32>
    %104 = vector.broadcast %103 : f32 to vector<1x1xf32>
    %105 = arith.cmpf oge, %104, %45 : vector<1x1xf32>
    %106 = arith.select %105, %94, %92 : vector<1x1xi1>, vector<1x1xi32>
    %c4096_i32 = arith.constant 4096 : i32
    %107 = vector.broadcast %c4096_i32 : i32 to vector<1x1xi32>
    %108 = arith.ori %106, %107 : vector<1x1xi32>
    %109 = vector.broadcast %108 : vector<1x1xi32> to vector<8x128xi32>
    %110 = arith.cmpi sge, %61, %109 : vector<8x128xi32>
    %cst_36 = arith.constant 1.000000e+00 : f32
    %cst_37 = arith.constant 0.000000e+00 : f32
    %111 = vector.broadcast %cst_36 : f32 to vector<8x128xf32>
    %112 = vector.broadcast %cst_37 : f32 to vector<8x128xf32>
    %113 = arith.select %110, %111, %112 : vector<8x128xi1>, vector<8x128xf32>
    %114 = vector.shape_cast %113 : vector<8x128xf32> to vector<1x8x128xf32>
    %cst_38 = arith.constant dense<0.000000e+00> : vector<1xf32>
    %115 = vector.multi_reduction <add>, %114, %cst_38 [1, 2] : vector<1x8x128xf32> to vector<1xf32>
    %116 = vector.shape_cast %115 : vector<1xf32> to vector<1x1x1xf32>
    %117 = vector.extract %116[0, 0, 0] : f32 from vector<1x1x1xf32>
    %118 = vector.broadcast %117 : f32 to vector<1x1xf32>
    %119 = arith.cmpf oge, %118, %45 : vector<1x1xf32>
    %120 = arith.select %119, %108, %106 : vector<1x1xi1>, vector<1x1xi32>
    %c2048_i32 = arith.constant 2048 : i32
    %121 = vector.broadcast %c2048_i32 : i32 to vector<1x1xi32>
    %122 = arith.ori %120, %121 : vector<1x1xi32>
    %123 = vector.broadcast %122 : vector<1x1xi32> to vector<8x128xi32>
    %124 = arith.cmpi sge, %61, %123 : vector<8x128xi32>
    %cst_39 = arith.constant 1.000000e+00 : f32
    %cst_40 = arith.constant 0.000000e+00 : f32
    %125 = vector.broadcast %cst_39 : f32 to vector<8x128xf32>
    %126 = vector.broadcast %cst_40 : f32 to vector<8x128xf32>
    %127 = arith.select %124, %125, %126 : vector<8x128xi1>, vector<8x128xf32>
    %128 = vector.shape_cast %127 : vector<8x128xf32> to vector<1x8x128xf32>
    %cst_41 = arith.constant dense<0.000000e+00> : vector<1xf32>
    %129 = vector.multi_reduction <add>, %128, %cst_41 [1, 2] : vector<1x8x128xf32> to vector<1xf32>
    %130 = vector.shape_cast %129 : vector<1xf32> to vector<1x1x1xf32>
    %131 = vector.extract %130[0, 0, 0] : f32 from vector<1x1x1xf32>
    %132 = vector.broadcast %131 : f32 to vector<1x1xf32>
    %133 = arith.cmpf oge, %132, %45 : vector<1x1xf32>
    %134 = arith.select %133, %122, %120 : vector<1x1xi1>, vector<1x1xi32>
    %c1024_i32 = arith.constant 1024 : i32
    %135 = vector.broadcast %c1024_i32 : i32 to vector<1x1xi32>
    %136 = arith.ori %134, %135 : vector<1x1xi32>
    %137 = vector.broadcast %136 : vector<1x1xi32> to vector<8x128xi32>
    %138 = arith.cmpi sge, %61, %137 : vector<8x128xi32>
    %cst_42 = arith.constant 1.000000e+00 : f32
    %cst_43 = arith.constant 0.000000e+00 : f32
    %139 = vector.broadcast %cst_42 : f32 to vector<8x128xf32>
    %140 = vector.broadcast %cst_43 : f32 to vector<8x128xf32>
    %141 = arith.select %138, %139, %140 : vector<8x128xi1>, vector<8x128xf32>
    %142 = vector.shape_cast %141 : vector<8x128xf32> to vector<1x8x128xf32>
    %cst_44 = arith.constant dense<0.000000e+00> : vector<1xf32>
    %143 = vector.multi_reduction <add>, %142, %cst_44 [1, 2] : vector<1x8x128xf32> to vector<1xf32>
    %144 = vector.shape_cast %143 : vector<1xf32> to vector<1x1x1xf32>
    %145 = vector.extract %144[0, 0, 0] : f32 from vector<1x1x1xf32>
    %146 = vector.broadcast %145 : f32 to vector<1x1xf32>
    %147 = arith.cmpf oge, %146, %45 : vector<1x1xf32>
    %148 = arith.select %147, %136, %134 : vector<1x1xi1>, vector<1x1xi32>
    %c512_i32 = arith.constant 512 : i32
    %149 = vector.broadcast %c512_i32 : i32 to vector<1x1xi32>
    %150 = arith.ori %148, %149 : vector<1x1xi32>
    %151 = vector.broadcast %150 : vector<1x1xi32> to vector<8x128xi32>
    %152 = arith.cmpi sge, %61, %151 : vector<8x128xi32>
    %cst_45 = arith.constant 1.000000e+00 : f32
    %cst_46 = arith.constant 0.000000e+00 : f32
    %153 = vector.broadcast %cst_45 : f32 to vector<8x128xf32>
    %154 = vector.broadcast %cst_46 : f32 to vector<8x128xf32>
    %155 = arith.select %152, %153, %154 : vector<8x128xi1>, vector<8x128xf32>
    %156 = vector.shape_cast %155 : vector<8x128xf32> to vector<1x8x128xf32>
    %cst_47 = arith.constant dense<0.000000e+00> : vector<1xf32>
    %157 = vector.multi_reduction <add>, %156, %cst_47 [1, 2] : vector<1x8x128xf32> to vector<1xf32>
    %158 = vector.shape_cast %157 : vector<1xf32> to vector<1x1x1xf32>
    %159 = vector.extract %158[0, 0, 0] : f32 from vector<1x1x1xf32>
    %160 = vector.broadcast %159 : f32 to vector<1x1xf32>
    %161 = arith.cmpf oge, %160, %45 : vector<1x1xf32>
    %162 = arith.select %161, %150, %148 : vector<1x1xi1>, vector<1x1xi32>
    %c256_i32 = arith.constant 256 : i32
    %163 = vector.broadcast %c256_i32 : i32 to vector<1x1xi32>
    %164 = arith.ori %162, %163 : vector<1x1xi32>
    %165 = vector.broadcast %164 : vector<1x1xi32> to vector<8x128xi32>
    %166 = arith.cmpi sge, %61, %165 : vector<8x128xi32>
    %cst_48 = arith.constant 1.000000e+00 : f32
    %cst_49 = arith.constant 0.000000e+00 : f32
    %167 = vector.broadcast %cst_48 : f32 to vector<8x128xf32>
    %168 = vector.broadcast %cst_49 : f32 to vector<8x128xf32>
    %169 = arith.select %166, %167, %168 : vector<8x128xi1>, vector<8x128xf32>
    %170 = vector.shape_cast %169 : vector<8x128xf32> to vector<1x8x128xf32>
    %cst_50 = arith.constant dense<0.000000e+00> : vector<1xf32>
    %171 = vector.multi_reduction <add>, %170, %cst_50 [1, 2] : vector<1x8x128xf32> to vector<1xf32>
    %172 = vector.shape_cast %171 : vector<1xf32> to vector<1x1x1xf32>
    %173 = vector.extract %172[0, 0, 0] : f32 from vector<1x1x1xf32>
    %174 = vector.broadcast %173 : f32 to vector<1x1xf32>
    %175 = arith.cmpf oge, %174, %45 : vector<1x1xf32>
    %176 = arith.select %175, %164, %162 : vector<1x1xi1>, vector<1x1xi32>
    %c128_i32_51 = arith.constant 128 : i32
    %177 = vector.broadcast %c128_i32_51 : i32 to vector<1x1xi32>
    %178 = arith.ori %176, %177 : vector<1x1xi32>
    %179 = vector.broadcast %178 : vector<1x1xi32> to vector<8x128xi32>
    %180 = arith.cmpi sge, %61, %179 : vector<8x128xi32>
    %cst_52 = arith.constant 1.000000e+00 : f32
    %cst_53 = arith.constant 0.000000e+00 : f32
    %181 = vector.broadcast %cst_52 : f32 to vector<8x128xf32>
    %182 = vector.broadcast %cst_53 : f32 to vector<8x128xf32>
    %183 = arith.select %180, %181, %182 : vector<8x128xi1>, vector<8x128xf32>
    %184 = vector.shape_cast %183 : vector<8x128xf32> to vector<1x8x128xf32>
    %cst_54 = arith.constant dense<0.000000e+00> : vector<1xf32>
    %185 = vector.multi_reduction <add>, %184, %cst_54 [1, 2] : vector<1x8x128xf32> to vector<1xf32>
    %186 = vector.shape_cast %185 : vector<1xf32> to vector<1x1x1xf32>
    %187 = vector.extract %186[0, 0, 0] : f32 from vector<1x1x1xf32>
    %188 = vector.broadcast %187 : f32 to vector<1x1xf32>
    %189 = arith.cmpf oge, %188, %45 : vector<1x1xf32>
    %190 = arith.select %189, %178, %176 : vector<1x1xi1>, vector<1x1xi32>
    %c64_i32_55 = arith.constant 64 : i32
    %191 = vector.broadcast %c64_i32_55 : i32 to vector<1x1xi32>
    %192 = arith.ori %190, %191 : vector<1x1xi32>
    %193 = vector.broadcast %192 : vector<1x1xi32> to vector<8x128xi32>
    %194 = arith.cmpi sge, %61, %193 : vector<8x128xi32>
    %cst_56 = arith.constant 1.000000e+00 : f32
    %cst_57 = arith.constant 0.000000e+00 : f32
    %195 = vector.broadcast %cst_56 : f32 to vector<8x128xf32>
    %196 = vector.broadcast %cst_57 : f32 to vector<8x128xf32>
    %197 = arith.select %194, %195, %196 : vector<8x128xi1>, vector<8x128xf32>
    %198 = vector.shape_cast %197 : vector<8x128xf32> to vector<1x8x128xf32>
    %cst_58 = arith.constant dense<0.000000e+00> : vector<1xf32>
    %199 = vector.multi_reduction <add>, %198, %cst_58 [1, 2] : vector<1x8x128xf32> to vector<1xf32>
    %200 = vector.shape_cast %199 : vector<1xf32> to vector<1x1x1xf32>
    %201 = vector.extract %200[0, 0, 0] : f32 from vector<1x1x1xf32>
    %202 = vector.broadcast %201 : f32 to vector<1x1xf32>
    %203 = arith.cmpf oge, %202, %45 : vector<1x1xf32>
    %204 = arith.select %203, %192, %190 : vector<1x1xi1>, vector<1x1xi32>
    %c32_i32 = arith.constant 32 : i32
    %205 = vector.broadcast %c32_i32 : i32 to vector<1x1xi32>
    %206 = arith.ori %204, %205 : vector<1x1xi32>
    %207 = vector.broadcast %206 : vector<1x1xi32> to vector<8x128xi32>
    %208 = arith.cmpi sge, %61, %207 : vector<8x128xi32>
    %cst_59 = arith.constant 1.000000e+00 : f32
    %cst_60 = arith.constant 0.000000e+00 : f32
    %209 = vector.broadcast %cst_59 : f32 to vector<8x128xf32>
    %210 = vector.broadcast %cst_60 : f32 to vector<8x128xf32>
    %211 = arith.select %208, %209, %210 : vector<8x128xi1>, vector<8x128xf32>
    %212 = vector.shape_cast %211 : vector<8x128xf32> to vector<1x8x128xf32>
    %cst_61 = arith.constant dense<0.000000e+00> : vector<1xf32>
    %213 = vector.multi_reduction <add>, %212, %cst_61 [1, 2] : vector<1x8x128xf32> to vector<1xf32>
    %214 = vector.shape_cast %213 : vector<1xf32> to vector<1x1x1xf32>
    %215 = vector.extract %214[0, 0, 0] : f32 from vector<1x1x1xf32>
    %216 = vector.broadcast %215 : f32 to vector<1x1xf32>
    %217 = arith.cmpf oge, %216, %45 : vector<1x1xf32>
    %218 = arith.select %217, %206, %204 : vector<1x1xi1>, vector<1x1xi32>
    %c16_i32_62 = arith.constant 16 : i32
    %219 = vector.broadcast %c16_i32_62 : i32 to vector<1x1xi32>
    %220 = arith.ori %218, %219 : vector<1x1xi32>
    %221 = vector.broadcast %220 : vector<1x1xi32> to vector<8x128xi32>
    %222 = arith.cmpi sge, %61, %221 : vector<8x128xi32>
    %cst_63 = arith.constant 1.000000e+00 : f32
    %cst_64 = arith.constant 0.000000e+00 : f32
    %223 = vector.broadcast %cst_63 : f32 to vector<8x128xf32>
    %224 = vector.broadcast %cst_64 : f32 to vector<8x128xf32>
    %225 = arith.select %222, %223, %224 : vector<8x128xi1>, vector<8x128xf32>
    %226 = vector.shape_cast %225 : vector<8x128xf32> to vector<1x8x128xf32>
    %cst_65 = arith.constant dense<0.000000e+00> : vector<1xf32>
    %227 = vector.multi_reduction <add>, %226, %cst_65 [1, 2] : vector<1x8x128xf32> to vector<1xf32>
    %228 = vector.shape_cast %227 : vector<1xf32> to vector<1x1x1xf32>
    %229 = vector.extract %228[0, 0, 0] : f32 from vector<1x1x1xf32>
    %230 = vector.broadcast %229 : f32 to vector<1x1xf32>
    %231 = arith.cmpf oge, %230, %45 : vector<1x1xf32>
    %232 = arith.select %231, %220, %218 : vector<1x1xi1>, vector<1x1xi32>
    %c8_i32 = arith.constant 8 : i32
    %233 = vector.broadcast %c8_i32 : i32 to vector<1x1xi32>
    %234 = arith.ori %232, %233 : vector<1x1xi32>
    %235 = vector.broadcast %234 : vector<1x1xi32> to vector<8x128xi32>
    %236 = arith.cmpi sge, %61, %235 : vector<8x128xi32>
    %cst_66 = arith.constant 1.000000e+00 : f32
    %cst_67 = arith.constant 0.000000e+00 : f32
    %237 = vector.broadcast %cst_66 : f32 to vector<8x128xf32>
    %238 = vector.broadcast %cst_67 : f32 to vector<8x128xf32>
    %239 = arith.select %236, %237, %238 : vector<8x128xi1>, vector<8x128xf32>
    %240 = vector.shape_cast %239 : vector<8x128xf32> to vector<1x8x128xf32>
    %cst_68 = arith.constant dense<0.000000e+00> : vector<1xf32>
    %241 = vector.multi_reduction <add>, %240, %cst_68 [1, 2] : vector<1x8x128xf32> to vector<1xf32>
    %242 = vector.shape_cast %241 : vector<1xf32> to vector<1x1x1xf32>
    %243 = vector.extract %242[0, 0, 0] : f32 from vector<1x1x1xf32>
    %244 = vector.broadcast %243 : f32 to vector<1x1xf32>
    %245 = arith.cmpf oge, %244, %45 : vector<1x1xf32>
    %246 = arith.select %245, %234, %232 : vector<1x1xi1>, vector<1x1xi32>
    %c4_i32 = arith.constant 4 : i32
    %247 = vector.broadcast %c4_i32 : i32 to vector<1x1xi32>
    %248 = arith.ori %246, %247 : vector<1x1xi32>
    %249 = vector.broadcast %248 : vector<1x1xi32> to vector<8x128xi32>
    %250 = arith.cmpi sge, %61, %249 : vector<8x128xi32>
    %cst_69 = arith.constant 1.000000e+00 : f32
    %cst_70 = arith.constant 0.000000e+00 : f32
    %251 = vector.broadcast %cst_69 : f32 to vector<8x128xf32>
    %252 = vector.broadcast %cst_70 : f32 to vector<8x128xf32>
    %253 = arith.select %250, %251, %252 : vector<8x128xi1>, vector<8x128xf32>
    %254 = vector.shape_cast %253 : vector<8x128xf32> to vector<1x8x128xf32>
    %cst_71 = arith.constant dense<0.000000e+00> : vector<1xf32>
    %255 = vector.multi_reduction <add>, %254, %cst_71 [1, 2] : vector<1x8x128xf32> to vector<1xf32>
    %256 = vector.shape_cast %255 : vector<1xf32> to vector<1x1x1xf32>
    %257 = vector.extract %256[0, 0, 0] : f32 from vector<1x1x1xf32>
    %258 = vector.broadcast %257 : f32 to vector<1x1xf32>
    %259 = arith.cmpf oge, %258, %45 : vector<1x1xf32>
    %260 = arith.select %259, %248, %246 : vector<1x1xi1>, vector<1x1xi32>
    %c2_i32 = arith.constant 2 : i32
    %261 = vector.broadcast %c2_i32 : i32 to vector<1x1xi32>
    %262 = arith.ori %260, %261 : vector<1x1xi32>
    %263 = vector.broadcast %262 : vector<1x1xi32> to vector<8x128xi32>
    %264 = arith.cmpi sge, %61, %263 : vector<8x128xi32>
    %cst_72 = arith.constant 1.000000e+00 : f32
    %cst_73 = arith.constant 0.000000e+00 : f32
    %265 = vector.broadcast %cst_72 : f32 to vector<8x128xf32>
    %266 = vector.broadcast %cst_73 : f32 to vector<8x128xf32>
    %267 = arith.select %264, %265, %266 : vector<8x128xi1>, vector<8x128xf32>
    %268 = vector.shape_cast %267 : vector<8x128xf32> to vector<1x8x128xf32>
    %cst_74 = arith.constant dense<0.000000e+00> : vector<1xf32>
    %269 = vector.multi_reduction <add>, %268, %cst_74 [1, 2] : vector<1x8x128xf32> to vector<1xf32>
    %270 = vector.shape_cast %269 : vector<1xf32> to vector<1x1x1xf32>
    %271 = vector.extract %270[0, 0, 0] : f32 from vector<1x1x1xf32>
    %272 = vector.broadcast %271 : f32 to vector<1x1xf32>
    %273 = arith.cmpf oge, %272, %45 : vector<1x1xf32>
    %274 = arith.select %273, %262, %260 : vector<1x1xi1>, vector<1x1xi32>
    %c1_i32 = arith.constant 1 : i32
    %275 = vector.broadcast %c1_i32 : i32 to vector<1x1xi32>
    %276 = arith.ori %274, %275 : vector<1x1xi32>
    %277 = vector.broadcast %276 : vector<1x1xi32> to vector<8x128xi32>
    %278 = arith.cmpi sge, %61, %277 : vector<8x128xi32>
    %cst_75 = arith.constant 1.000000e+00 : f32
    %cst_76 = arith.constant 0.000000e+00 : f32
    %279 = vector.broadcast %cst_75 : f32 to vector<8x128xf32>
    %280 = vector.broadcast %cst_76 : f32 to vector<8x128xf32>
    %281 = arith.select %278, %279, %280 : vector<8x128xi1>, vector<8x128xf32>
    %282 = vector.shape_cast %281 : vector<8x128xf32> to vector<1x8x128xf32>
    %cst_77 = arith.constant dense<0.000000e+00> : vector<1xf32>
    %283 = vector.multi_reduction <add>, %282, %cst_77 [1, 2] : vector<1x8x128xf32> to vector<1xf32>
    %284 = vector.shape_cast %283 : vector<1xf32> to vector<1x1x1xf32>
    %285 = vector.extract %284[0, 0, 0] : f32 from vector<1x1x1xf32>
    %286 = vector.broadcast %285 : f32 to vector<1x1xf32>
    %287 = arith.cmpf oge, %286, %45 : vector<1x1xf32>
    %288 = arith.select %287, %276, %274 : vector<1x1xi1>, vector<1x1xi32>
    %289 = vector.broadcast %288 : vector<1x1xi32> to vector<8x128xi32>
    %290 = arith.cmpi eq, %61, %289 : vector<8x128xi32>
    %291 = vector.broadcast %288 : vector<1x1xi32> to vector<8x128xi32>
    %292 = arith.cmpi sgt, %61, %291 : vector<8x128xi32>
    %cst_78 = arith.constant 1.000000e+00 : f32
    %cst_79 = arith.constant 0.000000e+00 : f32
    %293 = vector.broadcast %cst_78 : f32 to vector<8x128xf32>
    %294 = vector.broadcast %cst_79 : f32 to vector<8x128xf32>
    %295 = arith.select %292, %293, %294 : vector<8x128xi1>, vector<8x128xf32>
    %296 = vector.shape_cast %295 : vector<8x128xf32> to vector<1x8x128xf32>
    %cst_80 = arith.constant dense<0.000000e+00> : vector<1xf32>
    %297 = vector.multi_reduction <add>, %296, %cst_80 [1, 2] : vector<1x8x128xf32> to vector<1xf32>
    %298 = vector.shape_cast %297 : vector<1xf32> to vector<1x1x1xf32>
    %299 = vector.extract %298[0, 0, 0] : f32 from vector<1x1x1xf32>
    %300 = vector.broadcast %299 : f32 to vector<1x1xf32>
    %301 = arith.subf %45, %300 : vector<1x1xf32>
    %c0_i32_81 = arith.constant 0 : i32
    %302 = vector.broadcast %c0_i32_81 : i32 to vector<1x1xi32>
    %c32768_i32_82 = arith.constant 32768 : i32
    %303 = vector.broadcast %c32768_i32_82 : i32 to vector<1x1xi32>
    %304 = arith.ori %302, %303 : vector<1x1xi32>
    %305 = vector.broadcast %304 : vector<1x1xi32> to vector<8x128xi32>
    %306 = arith.cmpi sge, %63, %305 : vector<8x128xi32>
    %307 = arith.andi %306, %290 : vector<8x128xi1>
    %cst_83 = arith.constant 1.000000e+00 : f32
    %cst_84 = arith.constant 0.000000e+00 : f32
    %308 = vector.broadcast %cst_83 : f32 to vector<8x128xf32>
    %309 = vector.broadcast %cst_84 : f32 to vector<8x128xf32>
    %310 = arith.select %307, %308, %309 : vector<8x128xi1>, vector<8x128xf32>
    %311 = vector.shape_cast %310 : vector<8x128xf32> to vector<1x8x128xf32>
    %cst_85 = arith.constant dense<0.000000e+00> : vector<1xf32>
    %312 = vector.multi_reduction <add>, %311, %cst_85 [1, 2] : vector<1x8x128xf32> to vector<1xf32>
    %313 = vector.shape_cast %312 : vector<1xf32> to vector<1x1x1xf32>
    %314 = vector.extract %313[0, 0, 0] : f32 from vector<1x1x1xf32>
    %315 = vector.broadcast %314 : f32 to vector<1x1xf32>
    %316 = arith.cmpf oge, %315, %301 : vector<1x1xf32>
    %317 = arith.select %316, %304, %302 : vector<1x1xi1>, vector<1x1xi32>
    %c16384_i32_86 = arith.constant 16384 : i32
    %318 = vector.broadcast %c16384_i32_86 : i32 to vector<1x1xi32>
    %319 = arith.ori %317, %318 : vector<1x1xi32>
    %320 = vector.broadcast %319 : vector<1x1xi32> to vector<8x128xi32>
    %321 = arith.cmpi sge, %63, %320 : vector<8x128xi32>
    %322 = arith.andi %321, %290 : vector<8x128xi1>
    %cst_87 = arith.constant 1.000000e+00 : f32
    %cst_88 = arith.constant 0.000000e+00 : f32
    %323 = vector.broadcast %cst_87 : f32 to vector<8x128xf32>
    %324 = vector.broadcast %cst_88 : f32 to vector<8x128xf32>
    %325 = arith.select %322, %323, %324 : vector<8x128xi1>, vector<8x128xf32>
    %326 = vector.shape_cast %325 : vector<8x128xf32> to vector<1x8x128xf32>
    %cst_89 = arith.constant dense<0.000000e+00> : vector<1xf32>
    %327 = vector.multi_reduction <add>, %326, %cst_89 [1, 2] : vector<1x8x128xf32> to vector<1xf32>
    %328 = vector.shape_cast %327 : vector<1xf32> to vector<1x1x1xf32>
    %329 = vector.extract %328[0, 0, 0] : f32 from vector<1x1x1xf32>
    %330 = vector.broadcast %329 : f32 to vector<1x1xf32>
    %331 = arith.cmpf oge, %330, %301 : vector<1x1xf32>
    %332 = arith.select %331, %319, %317 : vector<1x1xi1>, vector<1x1xi32>
    %c8192_i32_90 = arith.constant 8192 : i32
    %333 = vector.broadcast %c8192_i32_90 : i32 to vector<1x1xi32>
    %334 = arith.ori %332, %333 : vector<1x1xi32>
    %335 = vector.broadcast %334 : vector<1x1xi32> to vector<8x128xi32>
    %336 = arith.cmpi sge, %63, %335 : vector<8x128xi32>
    %337 = arith.andi %336, %290 : vector<8x128xi1>
    %cst_91 = arith.constant 1.000000e+00 : f32
    %cst_92 = arith.constant 0.000000e+00 : f32
    %338 = vector.broadcast %cst_91 : f32 to vector<8x128xf32>
    %339 = vector.broadcast %cst_92 : f32 to vector<8x128xf32>
    %340 = arith.select %337, %338, %339 : vector<8x128xi1>, vector<8x128xf32>
    %341 = vector.shape_cast %340 : vector<8x128xf32> to vector<1x8x128xf32>
    %cst_93 = arith.constant dense<0.000000e+00> : vector<1xf32>
    %342 = vector.multi_reduction <add>, %341, %cst_93 [1, 2] : vector<1x8x128xf32> to vector<1xf32>
    %343 = vector.shape_cast %342 : vector<1xf32> to vector<1x1x1xf32>
    %344 = vector.extract %343[0, 0, 0] : f32 from vector<1x1x1xf32>
    %345 = vector.broadcast %344 : f32 to vector<1x1xf32>
    %346 = arith.cmpf oge, %345, %301 : vector<1x1xf32>
    %347 = arith.select %346, %334, %332 : vector<1x1xi1>, vector<1x1xi32>
    %c4096_i32_94 = arith.constant 4096 : i32
    %348 = vector.broadcast %c4096_i32_94 : i32 to vector<1x1xi32>
    %349 = arith.ori %347, %348 : vector<1x1xi32>
    %350 = vector.broadcast %349 : vector<1x1xi32> to vector<8x128xi32>
    %351 = arith.cmpi sge, %63, %350 : vector<8x128xi32>
    %352 = arith.andi %351, %290 : vector<8x128xi1>
    %cst_95 = arith.constant 1.000000e+00 : f32
    %cst_96 = arith.constant 0.000000e+00 : f32
    %353 = vector.broadcast %cst_95 : f32 to vector<8x128xf32>
    %354 = vector.broadcast %cst_96 : f32 to vector<8x128xf32>
    %355 = arith.select %352, %353, %354 : vector<8x128xi1>, vector<8x128xf32>
    %356 = vector.shape_cast %355 : vector<8x128xf32> to vector<1x8x128xf32>
    %cst_97 = arith.constant dense<0.000000e+00> : vector<1xf32>
    %357 = vector.multi_reduction <add>, %356, %cst_97 [1, 2] : vector<1x8x128xf32> to vector<1xf32>
    %358 = vector.shape_cast %357 : vector<1xf32> to vector<1x1x1xf32>
    %359 = vector.extract %358[0, 0, 0] : f32 from vector<1x1x1xf32>
    %360 = vector.broadcast %359 : f32 to vector<1x1xf32>
    %361 = arith.cmpf oge, %360, %301 : vector<1x1xf32>
    %362 = arith.select %361, %349, %347 : vector<1x1xi1>, vector<1x1xi32>
    %c2048_i32_98 = arith.constant 2048 : i32
    %363 = vector.broadcast %c2048_i32_98 : i32 to vector<1x1xi32>
    %364 = arith.ori %362, %363 : vector<1x1xi32>
    %365 = vector.broadcast %364 : vector<1x1xi32> to vector<8x128xi32>
    %366 = arith.cmpi sge, %63, %365 : vector<8x128xi32>
    %367 = arith.andi %366, %290 : vector<8x128xi1>
    %cst_99 = arith.constant 1.000000e+00 : f32
    %cst_100 = arith.constant 0.000000e+00 : f32
    %368 = vector.broadcast %cst_99 : f32 to vector<8x128xf32>
    %369 = vector.broadcast %cst_100 : f32 to vector<8x128xf32>
    %370 = arith.select %367, %368, %369 : vector<8x128xi1>, vector<8x128xf32>
    %371 = vector.shape_cast %370 : vector<8x128xf32> to vector<1x8x128xf32>
    %cst_101 = arith.constant dense<0.000000e+00> : vector<1xf32>
    %372 = vector.multi_reduction <add>, %371, %cst_101 [1, 2] : vector<1x8x128xf32> to vector<1xf32>
    %373 = vector.shape_cast %372 : vector<1xf32> to vector<1x1x1xf32>
    %374 = vector.extract %373[0, 0, 0] : f32 from vector<1x1x1xf32>
    %375 = vector.broadcast %374 : f32 to vector<1x1xf32>
    %376 = arith.cmpf oge, %375, %301 : vector<1x1xf32>
    %377 = arith.select %376, %364, %362 : vector<1x1xi1>, vector<1x1xi32>
    %c1024_i32_102 = arith.constant 1024 : i32
    %378 = vector.broadcast %c1024_i32_102 : i32 to vector<1x1xi32>
    %379 = arith.ori %377, %378 : vector<1x1xi32>
    %380 = vector.broadcast %379 : vector<1x1xi32> to vector<8x128xi32>
    %381 = arith.cmpi sge, %63, %380 : vector<8x128xi32>
    %382 = arith.andi %381, %290 : vector<8x128xi1>
    %cst_103 = arith.constant 1.000000e+00 : f32
    %cst_104 = arith.constant 0.000000e+00 : f32
    %383 = vector.broadcast %cst_103 : f32 to vector<8x128xf32>
    %384 = vector.broadcast %cst_104 : f32 to vector<8x128xf32>
    %385 = arith.select %382, %383, %384 : vector<8x128xi1>, vector<8x128xf32>
    %386 = vector.shape_cast %385 : vector<8x128xf32> to vector<1x8x128xf32>
    %cst_105 = arith.constant dense<0.000000e+00> : vector<1xf32>
    %387 = vector.multi_reduction <add>, %386, %cst_105 [1, 2] : vector<1x8x128xf32> to vector<1xf32>
    %388 = vector.shape_cast %387 : vector<1xf32> to vector<1x1x1xf32>
    %389 = vector.extract %388[0, 0, 0] : f32 from vector<1x1x1xf32>
    %390 = vector.broadcast %389 : f32 to vector<1x1xf32>
    %391 = arith.cmpf oge, %390, %301 : vector<1x1xf32>
    %392 = arith.select %391, %379, %377 : vector<1x1xi1>, vector<1x1xi32>
    %c512_i32_106 = arith.constant 512 : i32
    %393 = vector.broadcast %c512_i32_106 : i32 to vector<1x1xi32>
    %394 = arith.ori %392, %393 : vector<1x1xi32>
    %395 = vector.broadcast %394 : vector<1x1xi32> to vector<8x128xi32>
    %396 = arith.cmpi sge, %63, %395 : vector<8x128xi32>
    %397 = arith.andi %396, %290 : vector<8x128xi1>
    %cst_107 = arith.constant 1.000000e+00 : f32
    %cst_108 = arith.constant 0.000000e+00 : f32
    %398 = vector.broadcast %cst_107 : f32 to vector<8x128xf32>
    %399 = vector.broadcast %cst_108 : f32 to vector<8x128xf32>
    %400 = arith.select %397, %398, %399 : vector<8x128xi1>, vector<8x128xf32>
    %401 = vector.shape_cast %400 : vector<8x128xf32> to vector<1x8x128xf32>
    %cst_109 = arith.constant dense<0.000000e+00> : vector<1xf32>
    %402 = vector.multi_reduction <add>, %401, %cst_109 [1, 2] : vector<1x8x128xf32> to vector<1xf32>
    %403 = vector.shape_cast %402 : vector<1xf32> to vector<1x1x1xf32>
    %404 = vector.extract %403[0, 0, 0] : f32 from vector<1x1x1xf32>
    %405 = vector.broadcast %404 : f32 to vector<1x1xf32>
    %406 = arith.cmpf oge, %405, %301 : vector<1x1xf32>
    %407 = arith.select %406, %394, %392 : vector<1x1xi1>, vector<1x1xi32>
    %c256_i32_110 = arith.constant 256 : i32
    %408 = vector.broadcast %c256_i32_110 : i32 to vector<1x1xi32>
    %409 = arith.ori %407, %408 : vector<1x1xi32>
    %410 = vector.broadcast %409 : vector<1x1xi32> to vector<8x128xi32>
    %411 = arith.cmpi sge, %63, %410 : vector<8x128xi32>
    %412 = arith.andi %411, %290 : vector<8x128xi1>
    %cst_111 = arith.constant 1.000000e+00 : f32
    %cst_112 = arith.constant 0.000000e+00 : f32
    %413 = vector.broadcast %cst_111 : f32 to vector<8x128xf32>
    %414 = vector.broadcast %cst_112 : f32 to vector<8x128xf32>
    %415 = arith.select %412, %413, %414 : vector<8x128xi1>, vector<8x128xf32>
    %416 = vector.shape_cast %415 : vector<8x128xf32> to vector<1x8x128xf32>
    %cst_113 = arith.constant dense<0.000000e+00> : vector<1xf32>
    %417 = vector.multi_reduction <add>, %416, %cst_113 [1, 2] : vector<1x8x128xf32> to vector<1xf32>
    %418 = vector.shape_cast %417 : vector<1xf32> to vector<1x1x1xf32>
    %419 = vector.extract %418[0, 0, 0] : f32 from vector<1x1x1xf32>
    %420 = vector.broadcast %419 : f32 to vector<1x1xf32>
    %421 = arith.cmpf oge, %420, %301 : vector<1x1xf32>
    %422 = arith.select %421, %409, %407 : vector<1x1xi1>, vector<1x1xi32>
    %c128_i32_114 = arith.constant 128 : i32
    %423 = vector.broadcast %c128_i32_114 : i32 to vector<1x1xi32>
    %424 = arith.ori %422, %423 : vector<1x1xi32>
    %425 = vector.broadcast %424 : vector<1x1xi32> to vector<8x128xi32>
    %426 = arith.cmpi sge, %63, %425 : vector<8x128xi32>
    %427 = arith.andi %426, %290 : vector<8x128xi1>
    %cst_115 = arith.constant 1.000000e+00 : f32
    %cst_116 = arith.constant 0.000000e+00 : f32
    %428 = vector.broadcast %cst_115 : f32 to vector<8x128xf32>
    %429 = vector.broadcast %cst_116 : f32 to vector<8x128xf32>
    %430 = arith.select %427, %428, %429 : vector<8x128xi1>, vector<8x128xf32>
    %431 = vector.shape_cast %430 : vector<8x128xf32> to vector<1x8x128xf32>
    %cst_117 = arith.constant dense<0.000000e+00> : vector<1xf32>
    %432 = vector.multi_reduction <add>, %431, %cst_117 [1, 2] : vector<1x8x128xf32> to vector<1xf32>
    %433 = vector.shape_cast %432 : vector<1xf32> to vector<1x1x1xf32>
    %434 = vector.extract %433[0, 0, 0] : f32 from vector<1x1x1xf32>
    %435 = vector.broadcast %434 : f32 to vector<1x1xf32>
    %436 = arith.cmpf oge, %435, %301 : vector<1x1xf32>
    %437 = arith.select %436, %424, %422 : vector<1x1xi1>, vector<1x1xi32>
    %c64_i32_118 = arith.constant 64 : i32
    %438 = vector.broadcast %c64_i32_118 : i32 to vector<1x1xi32>
    %439 = arith.ori %437, %438 : vector<1x1xi32>
    %440 = vector.broadcast %439 : vector<1x1xi32> to vector<8x128xi32>
    %441 = arith.cmpi sge, %63, %440 : vector<8x128xi32>
    %442 = arith.andi %441, %290 : vector<8x128xi1>
    %cst_119 = arith.constant 1.000000e+00 : f32
    %cst_120 = arith.constant 0.000000e+00 : f32
    %443 = vector.broadcast %cst_119 : f32 to vector<8x128xf32>
    %444 = vector.broadcast %cst_120 : f32 to vector<8x128xf32>
    %445 = arith.select %442, %443, %444 : vector<8x128xi1>, vector<8x128xf32>
    %446 = vector.shape_cast %445 : vector<8x128xf32> to vector<1x8x128xf32>
    %cst_121 = arith.constant dense<0.000000e+00> : vector<1xf32>
    %447 = vector.multi_reduction <add>, %446, %cst_121 [1, 2] : vector<1x8x128xf32> to vector<1xf32>
    %448 = vector.shape_cast %447 : vector<1xf32> to vector<1x1x1xf32>
    %449 = vector.extract %448[0, 0, 0] : f32 from vector<1x1x1xf32>
    %450 = vector.broadcast %449 : f32 to vector<1x1xf32>
    %451 = arith.cmpf oge, %450, %301 : vector<1x1xf32>
    %452 = arith.select %451, %439, %437 : vector<1x1xi1>, vector<1x1xi32>
    %c32_i32_122 = arith.constant 32 : i32
    %453 = vector.broadcast %c32_i32_122 : i32 to vector<1x1xi32>
    %454 = arith.ori %452, %453 : vector<1x1xi32>
    %455 = vector.broadcast %454 : vector<1x1xi32> to vector<8x128xi32>
    %456 = arith.cmpi sge, %63, %455 : vector<8x128xi32>
    %457 = arith.andi %456, %290 : vector<8x128xi1>
    %cst_123 = arith.constant 1.000000e+00 : f32
    %cst_124 = arith.constant 0.000000e+00 : f32
    %458 = vector.broadcast %cst_123 : f32 to vector<8x128xf32>
    %459 = vector.broadcast %cst_124 : f32 to vector<8x128xf32>
    %460 = arith.select %457, %458, %459 : vector<8x128xi1>, vector<8x128xf32>
    %461 = vector.shape_cast %460 : vector<8x128xf32> to vector<1x8x128xf32>
    %cst_125 = arith.constant dense<0.000000e+00> : vector<1xf32>
    %462 = vector.multi_reduction <add>, %461, %cst_125 [1, 2] : vector<1x8x128xf32> to vector<1xf32>
    %463 = vector.shape_cast %462 : vector<1xf32> to vector<1x1x1xf32>
    %464 = vector.extract %463[0, 0, 0] : f32 from vector<1x1x1xf32>
    %465 = vector.broadcast %464 : f32 to vector<1x1xf32>
    %466 = arith.cmpf oge, %465, %301 : vector<1x1xf32>
    %467 = arith.select %466, %454, %452 : vector<1x1xi1>, vector<1x1xi32>
    %c16_i32_126 = arith.constant 16 : i32
    %468 = vector.broadcast %c16_i32_126 : i32 to vector<1x1xi32>
    %469 = arith.ori %467, %468 : vector<1x1xi32>
    %470 = vector.broadcast %469 : vector<1x1xi32> to vector<8x128xi32>
    %471 = arith.cmpi sge, %63, %470 : vector<8x128xi32>
    %472 = arith.andi %471, %290 : vector<8x128xi1>
    %cst_127 = arith.constant 1.000000e+00 : f32
    %cst_128 = arith.constant 0.000000e+00 : f32
    %473 = vector.broadcast %cst_127 : f32 to vector<8x128xf32>
    %474 = vector.broadcast %cst_128 : f32 to vector<8x128xf32>
    %475 = arith.select %472, %473, %474 : vector<8x128xi1>, vector<8x128xf32>
    %476 = vector.shape_cast %475 : vector<8x128xf32> to vector<1x8x128xf32>
    %cst_129 = arith.constant dense<0.000000e+00> : vector<1xf32>
    %477 = vector.multi_reduction <add>, %476, %cst_129 [1, 2] : vector<1x8x128xf32> to vector<1xf32>
    %478 = vector.shape_cast %477 : vector<1xf32> to vector<1x1x1xf32>
    %479 = vector.extract %478[0, 0, 0] : f32 from vector<1x1x1xf32>
    %480 = vector.broadcast %479 : f32 to vector<1x1xf32>
    %481 = arith.cmpf oge, %480, %301 : vector<1x1xf32>
    %482 = arith.select %481, %469, %467 : vector<1x1xi1>, vector<1x1xi32>
    %c8_i32_130 = arith.constant 8 : i32
    %483 = vector.broadcast %c8_i32_130 : i32 to vector<1x1xi32>
    %484 = arith.ori %482, %483 : vector<1x1xi32>
    %485 = vector.broadcast %484 : vector<1x1xi32> to vector<8x128xi32>
    %486 = arith.cmpi sge, %63, %485 : vector<8x128xi32>
    %487 = arith.andi %486, %290 : vector<8x128xi1>
    %cst_131 = arith.constant 1.000000e+00 : f32
    %cst_132 = arith.constant 0.000000e+00 : f32
    %488 = vector.broadcast %cst_131 : f32 to vector<8x128xf32>
    %489 = vector.broadcast %cst_132 : f32 to vector<8x128xf32>
    %490 = arith.select %487, %488, %489 : vector<8x128xi1>, vector<8x128xf32>
    %491 = vector.shape_cast %490 : vector<8x128xf32> to vector<1x8x128xf32>
    %cst_133 = arith.constant dense<0.000000e+00> : vector<1xf32>
    %492 = vector.multi_reduction <add>, %491, %cst_133 [1, 2] : vector<1x8x128xf32> to vector<1xf32>
    %493 = vector.shape_cast %492 : vector<1xf32> to vector<1x1x1xf32>
    %494 = vector.extract %493[0, 0, 0] : f32 from vector<1x1x1xf32>
    %495 = vector.broadcast %494 : f32 to vector<1x1xf32>
    %496 = arith.cmpf oge, %495, %301 : vector<1x1xf32>
    %497 = arith.select %496, %484, %482 : vector<1x1xi1>, vector<1x1xi32>
    %c4_i32_134 = arith.constant 4 : i32
    %498 = vector.broadcast %c4_i32_134 : i32 to vector<1x1xi32>
    %499 = arith.ori %497, %498 : vector<1x1xi32>
    %500 = vector.broadcast %499 : vector<1x1xi32> to vector<8x128xi32>
    %501 = arith.cmpi sge, %63, %500 : vector<8x128xi32>
    %502 = arith.andi %501, %290 : vector<8x128xi1>
    %cst_135 = arith.constant 1.000000e+00 : f32
    %cst_136 = arith.constant 0.000000e+00 : f32
    %503 = vector.broadcast %cst_135 : f32 to vector<8x128xf32>
    %504 = vector.broadcast %cst_136 : f32 to vector<8x128xf32>
    %505 = arith.select %502, %503, %504 : vector<8x128xi1>, vector<8x128xf32>
    %506 = vector.shape_cast %505 : vector<8x128xf32> to vector<1x8x128xf32>
    %cst_137 = arith.constant dense<0.000000e+00> : vector<1xf32>
    %507 = vector.multi_reduction <add>, %506, %cst_137 [1, 2] : vector<1x8x128xf32> to vector<1xf32>
    %508 = vector.shape_cast %507 : vector<1xf32> to vector<1x1x1xf32>
    %509 = vector.extract %508[0, 0, 0] : f32 from vector<1x1x1xf32>
    %510 = vector.broadcast %509 : f32 to vector<1x1xf32>
    %511 = arith.cmpf oge, %510, %301 : vector<1x1xf32>
    %512 = arith.select %511, %499, %497 : vector<1x1xi1>, vector<1x1xi32>
    %c2_i32_138 = arith.constant 2 : i32
    %513 = vector.broadcast %c2_i32_138 : i32 to vector<1x1xi32>
    %514 = arith.ori %512, %513 : vector<1x1xi32>
    %515 = vector.broadcast %514 : vector<1x1xi32> to vector<8x128xi32>
    %516 = arith.cmpi sge, %63, %515 : vector<8x128xi32>
    %517 = arith.andi %516, %290 : vector<8x128xi1>
    %cst_139 = arith.constant 1.000000e+00 : f32
    %cst_140 = arith.constant 0.000000e+00 : f32
    %518 = vector.broadcast %cst_139 : f32 to vector<8x128xf32>
    %519 = vector.broadcast %cst_140 : f32 to vector<8x128xf32>
    %520 = arith.select %517, %518, %519 : vector<8x128xi1>, vector<8x128xf32>
    %521 = vector.shape_cast %520 : vector<8x128xf32> to vector<1x8x128xf32>
    %cst_141 = arith.constant dense<0.000000e+00> : vector<1xf32>
    %522 = vector.multi_reduction <add>, %521, %cst_141 [1, 2] : vector<1x8x128xf32> to vector<1xf32>
    %523 = vector.shape_cast %522 : vector<1xf32> to vector<1x1x1xf32>
    %524 = vector.extract %523[0, 0, 0] : f32 from vector<1x1x1xf32>
    %525 = vector.broadcast %524 : f32 to vector<1x1xf32>
    %526 = arith.cmpf oge, %525, %301 : vector<1x1xf32>
    %527 = arith.select %526, %514, %512 : vector<1x1xi1>, vector<1x1xi32>
    %c1_i32_142 = arith.constant 1 : i32
    %528 = vector.broadcast %c1_i32_142 : i32 to vector<1x1xi32>
    %529 = arith.ori %527, %528 : vector<1x1xi32>
    %530 = vector.broadcast %529 : vector<1x1xi32> to vector<8x128xi32>
    %531 = arith.cmpi sge, %63, %530 : vector<8x128xi32>
    %532 = arith.andi %531, %290 : vector<8x128xi1>
    %cst_143 = arith.constant 1.000000e+00 : f32
    %cst_144 = arith.constant 0.000000e+00 : f32
    %533 = vector.broadcast %cst_143 : f32 to vector<8x128xf32>
    %534 = vector.broadcast %cst_144 : f32 to vector<8x128xf32>
    %535 = arith.select %532, %533, %534 : vector<8x128xi1>, vector<8x128xf32>
    %536 = vector.shape_cast %535 : vector<8x128xf32> to vector<1x8x128xf32>
    %cst_145 = arith.constant dense<0.000000e+00> : vector<1xf32>
    %537 = vector.multi_reduction <add>, %536, %cst_145 [1, 2] : vector<1x8x128xf32> to vector<1xf32>
    %538 = vector.shape_cast %537 : vector<1xf32> to vector<1x1x1xf32>
    %539 = vector.extract %538[0, 0, 0] : f32 from vector<1x1x1xf32>
    %540 = vector.broadcast %539 : f32 to vector<1x1xf32>
    %541 = arith.cmpf oge, %540, %301 : vector<1x1xf32>
    %542 = arith.select %541, %529, %527 : vector<1x1xi1>, vector<1x1xi32>
    %543 = vector.broadcast %288 : vector<1x1xi32> to vector<8x128xi32>
    %544 = arith.cmpi sgt, %61, %543 : vector<8x128xi32>
    %545 = vector.broadcast %542 : vector<1x1xi32> to vector<8x128xi32>
    %546 = arith.cmpi sge, %63, %545 : vector<8x128xi32>
    %547 = arith.andi %290, %546 : vector<8x128xi1>
    %548 = arith.ori %544, %547 : vector<8x128xi1>
    %cst_146 = arith.constant 1.000000e+00 : f32
    %549 = vector.broadcast %cst_146 : f32 to vector<1x1xf32>
    %550 = arith.cmpf oge, %45, %549 : vector<1x1xf32>
    %551 = vector.broadcast %550 : vector<1x1xi1> to vector<8x128xi1>
    %552 = arith.andi %548, %551 : vector<8x128xi1>
    %553 = arith.ori %16, %552 : vector<8x128xi1>
    %554 = arith.andi %553, %14 : vector<8x128xi1>
    %cst_147 = arith.constant 0.000000e+00 : f32
    %555 = vector.broadcast %cst_147 : f32 to vector<8x128xf32>
    %556 = arith.select %554, %35, %555 : vector<8x128xi1>, vector<8x128xf32>
    %557 = vector.shape_cast %556 : vector<8x128xf32> to vector<1x8x128xf32>
    %cst_148 = arith.constant dense<0.000000e+00> : vector<1xf32>
    %558 = vector.multi_reduction <add>, %557, %cst_148 [1, 2] : vector<1x8x128xf32> to vector<1xf32>
    %559 = vector.shape_cast %558 : vector<1xf32> to vector<1x1x1xf32>
    %560 = vector.extract %559[0, 0, 0] : f32 from vector<1x1x1xf32>
    %561 = vector.broadcast %560 : f32 to vector<1x1xf32>
    %562 = arith.subf %5, %7 : vector<8x8x128xf32>
    %563 = math.absf %562 : vector<8x8x128xf32>
    %cst_149 = arith.constant 1.000000e+00 : f32
    %564 = vector.broadcast %cst_149 : f32 to vector<8x8x128xf32>
    %565 = arith.cmpf olt, %563, %564 : vector<8x8x128xf32>
    %cst_150 = arith.constant 5.000000e-01 : f32
    %566 = vector.broadcast %cst_150 : f32 to vector<8x8x128xf32>
    %567 = arith.mulf %566, %562 : vector<8x8x128xf32>
    %568 = arith.mulf %567, %562 : vector<8x8x128xf32>
    %cst_151 = arith.constant 5.000000e-01 : f32
    %569 = vector.broadcast %cst_151 : f32 to vector<8x8x128xf32>
    %570 = arith.subf %563, %569 : vector<8x8x128xf32>
    %571 = arith.select %565, %568, %570 : vector<8x8x128xi1>, vector<8x8x128xf32>
    %cst_152 = arith.constant dense<0.000000e+00> : vector<8x128xf32>
    %572 = vector.multi_reduction <add>, %571, %cst_152 [0] : vector<8x8x128xf32> to vector<8x128xf32>
    %cst_153 = arith.constant 0.000000e+00 : f32
    %573 = vector.broadcast %cst_153 : f32 to vector<8x128xf32>
    %574 = arith.select %16, %572, %573 : vector<8x128xi1>, vector<8x128xf32>
    %575 = vector.shape_cast %574 : vector<8x128xf32> to vector<1x8x128xf32>
    %cst_154 = arith.constant dense<0.000000e+00> : vector<1xf32>
    %576 = vector.multi_reduction <add>, %575, %cst_154 [1, 2] : vector<1x8x128xf32> to vector<1xf32>
    %577 = vector.shape_cast %576 : vector<1xf32> to vector<1x1x1xf32>
    %578 = vector.extract %577[0, 0, 0] : f32 from vector<1x1x1xf32>
    %579 = vector.broadcast %578 : f32 to vector<1x1xf32>
    %580 = tpu.iota {dimensions = array<i32: 0>} : vector<8x128xi32>
    %c0_i32_155 = arith.constant 0 : i32
    %581 = vector.broadcast %c0_i32_155 : i32 to vector<8x128xi32>
    %582 = arith.cmpi eq, %580, %581 : vector<8x128xi32>
    %c1_i32_156 = arith.constant 1 : i32
    %583 = vector.broadcast %c1_i32_156 : i32 to vector<8x128xi32>
    %584 = arith.cmpi eq, %580, %583 : vector<8x128xi32>
    %c2_i32_157 = arith.constant 2 : i32
    %585 = vector.broadcast %c2_i32_157 : i32 to vector<8x128xi32>
    %586 = arith.cmpi eq, %580, %585 : vector<8x128xi32>
    %cst_158 = arith.constant 0.000000e+00 : f32
    %587 = vector.shape_cast %43 : vector<1x1xf32> to vector<1x1xf32>
    %588 = vector.broadcast %587 : vector<1x1xf32> to vector<8x128xf32>
    %589 = vector.broadcast %cst_158 : f32 to vector<8x128xf32>
    %590 = arith.select %586, %588, %589 : vector<8x128xi1>, vector<8x128xf32>
    %591 = vector.shape_cast %561 : vector<1x1xf32> to vector<1x1xf32>
    %592 = vector.broadcast %591 : vector<1x1xf32> to vector<8x128xf32>
    %593 = arith.select %584, %592, %590 : vector<8x128xi1>, vector<8x128xf32>
    %594 = vector.shape_cast %579 : vector<1x1xf32> to vector<1x1xf32>
    %595 = vector.broadcast %594 : vector<1x1xf32> to vector<8x128xf32>
    %596 = arith.select %582, %595, %593 : vector<8x128xi1>, vector<8x128xf32>
    %c0_159 = arith.constant 0 : index
    %c0_160 = arith.constant 0 : index
    %c0_161 = arith.constant 0 : index
    %597 = vector.load %arg5[%c0_159, %c0_160, %c0_161] : memref<1x8x128xf32, #tpu.memory_space<vmem>>, vector<1x8x128xf32>
    %598 = vector.shape_cast %597 : vector<1x8x128xf32> to vector<8x128xf32>
    %599 = vector.shape_cast %596 : vector<8x128xf32> to vector<1x8x128xf32>
    tpu.vector_store %arg5[%c0_159, %c0_160, %c0_161], %599 {strides = array<i32>} : memref<1x8x128xf32, #tpu.memory_space<vmem>>, vector<1x8x128xf32>,
    return
  }
  func.func @transform_0(%arg0: i32) -> (i32, i32, i32, i32) {
    %c0_i32 = arith.constant 0 : i32
    %c0_i32_0 = arith.constant 0 : i32
    %c0_i32_1 = arith.constant 0 : i32
    %c0_i32_2 = arith.constant 0 : i32
    return %arg0, %c0_i32, %c0_i32_0, %c0_i32_1 : i32, i32, i32, i32
  }
  func.func @transform_1(%arg0: i32) -> (i32, i32, i32) {
    %c0_i32 = arith.constant 0 : i32
    %c0_i32_0 = arith.constant 0 : i32
    %c0_i32_1 = arith.constant 0 : i32
    return %arg0, %c0_i32, %c0_i32_0 : i32, i32, i32
  }
  func.func @transform_2(%arg0: i32) -> (i32, i32, i32, i32) {
    %c0_i32 = arith.constant 0 : i32
    %c0_i32_0 = arith.constant 0 : i32
    %c0_i32_1 = arith.constant 0 : i32
    %c0_i32_2 = arith.constant 0 : i32
    return %arg0, %c0_i32, %c0_i32_0, %c0_i32_1 : i32, i32, i32, i32
  }
  func.func @transform_3(%arg0: i32) -> (i32, i32, i32, i32) {
    %c0_i32 = arith.constant 0 : i32
    %c0_i32_0 = arith.constant 0 : i32
    %c0_i32_1 = arith.constant 0 : i32
    %c0_i32_2 = arith.constant 0 : i32
    return %arg0, %c0_i32, %c0_i32_0, %c0_i32_1 : i32, i32, i32, i32
  }
  func.func @transform_4(%arg0: i32) -> (i32, i32, i32) {
    %c0_i32 = arith.constant 0 : i32
    %c0_i32_0 = arith.constant 0 : i32
    %c0_i32_1 = arith.constant 0 : i32
    return %arg0, %c0_i32, %c0_i32_0 : i32, i32, i32
  }
}

</mosaic_0001>

<llo_original>
// kernel: tpu_custom_call.1
$region0: #{tpu_custom_call.1}
  #allocation0 [shape = 'u32[]', space=smem, size = 0x4, offset = 0x4, fixed_abs, tag = 'smem constant byte address 0x4 - core index']
  #allocation1 [shape = 'u32[144,128]{1,0:T(1,128)}', space=vmem, size = 0x12000, scoped, tag = 'internal scratch']
  %s0 = inlined_call_operand.hbm [shape: f32[2,8,8,128], index: 0, kind: input, shape index: {}]
  %s1 = inlined_call_operand.hbm [shape: s32[2,8,128], index: 1, kind: input, shape index: {}]
  %s2 = inlined_call_operand.hbm [shape: f32[2,8,8,128], index: 2, kind: input, shape index: {}]
  %s3 = inlined_call_operand.hbm [shape: f32[2,8,8,128], index: 3, kind: input, shape index: {}]
  %s4 = inlined_call_operand.hbm [shape: f32[2,8,128], index: 4, kind: output, shape index: {}]
  %s5 = sld [smem:[#allocation0]]
  $region65: #{tpu_custom_call.1} parent=0
    _
  %s7 = ssub.s32 1, %s5
  %s8 = scalar_select 0, %s7, %s5
  $region1: #{tpu_custom_call.1} parent=0
    #allocation2 [shape = 'u8[65536]{0}', space=vmem, size = 0x10000, scoped, tag = 'input window, operand 0']
    #allocation3 [shape = 's32[2]{0}', space=sflag, size = 0x8, scoped, tag = 'scoped memory for tpu_custom_call.1']
    #allocation4 [shape = 's32[2]{0}', space=sflag, size = 0x8, scoped, tag = 'scoped memory for tpu_custom_call.1']
    #allocation5 [shape = 'u8[8192]{0}', space=vmem, size = 0x2000, scoped, tag = 'input window, operand 1']
    #allocation6 [shape = 's32[2]{0}', space=sflag, size = 0x8, scoped, tag = 'scoped memory for tpu_custom_call.1']
    #allocation7 [shape = 'u8[65536]{0}', space=vmem, size = 0x10000, scoped, tag = 'input window, operand 2']
    #allocation8 [shape = 'u8[65536]{0}', space=vmem, size = 0x10000, scoped, tag = 'input window, operand 3']
    #allocation9 [shape = 's32[2]{0}', space=sflag, size = 0x8, scoped, tag = 'scoped memory for tpu_custom_call.1']
    #allocation10 [shape = 'u8[8192]{0}', space=vmem, size = 0x2000, scoped, tag = 'output window, operand 0']
    %9 = vsyncpa [#allocation3], 0
    %s10 = scalar_lea.sflag [#allocation3], 1
    %11 = vsyncpa %s10, 0
    %12 = vsyncpa [#allocation6], 0
    %s13 = scalar_lea.sflag [#allocation6], 1
    %14 = vsyncpa %s13, 0
    %15 = vsyncpa [#allocation9], 0
    %s16 = scalar_lea.sflag [#allocation9], 1
    %17 = vsyncpa %s16, 0
    %18 = vsyncpa [#allocation4], 0
    %s19 = scalar_lea.sflag [#allocation4], 1
    %20 = vsyncpa %s19, 0
    loop: start=0, step=1, limit=4
    $region2: #{tpu_custom_call.1} parent=1 // loop_pre_header
      _
    $region3: #{tpu_custom_call.1} parent=1 // loop_header
      %s22 = sphi 0, %s26
      %p23 = scmp.ge.s32.totalorder %s22, 4
      %s32 = sphi 0, %s34
      %s35 = sphi 0, %s32
      %s36 = sphi 0, %s35
      %s52 = sphi 0, %s36
      %s58 = sphi 0, %s60
      %s61 = sphi 0, %s58
      %s62 = sphi 0, %s61
      %s78 = sphi 0, %s62
      %s84 = sphi 0, %s86
      %s87 = sphi 0, %s84
      %s88 = sphi 0, %s87
      %s104 = sphi 0, %s88
      %s110 = sphi 0, %s112
      %s113 = sphi 0, %s110
      %s114 = sphi 0, %s113
      %s130 = sphi 0, %s114
      %s136 = sphi 0, %s138
      %s139 = sphi 0, %s136
      %s140 = sphi 0, %s139
      %s156 = sphi 0, %s140
    $region4: #{tpu_custom_call.1} parent=1 // loop_header_branch
      %25 = sbr.rel (%p23) target = $region8
    $region5: #{tpu_custom_call.1} parent=1 // loop_body
      %s27 = ssub.s32 %s22, 1
      %s28 = ssub.s32 %s22, 2
      %s29 = sadd.s32 %s22, 1
      %s30 = ssub.s32 %s22, %s29
      %p31 = scmp.eq.s32.totalorder %s30, 0
      %s33 = sadd.s32 %s32, 1
      %s34 = scalar_select %p31, %s32, %s33
      %p37 = pneg %p31
      %p38 = scmp.eq.s32.totalorder %s22, 1
      %p39 = por %p37, %p38
      %p40 = scmp.ne.s32.totalorder %s32, %s35
      %p41 = scmp.eq.s32.totalorder %s22, 0
      %p42 = por %p40, %p41
      %p43 = scmp.ne.s32.totalorder %s32, %s35
      %p44 = scmp.eq.s32.totalorder %s27, 1
      %p45 = por %p43, %p44
      %p46 = scmp.ne.s32.totalorder %s35, %s36
      %p47 = scmp.eq.s32.totalorder %s27, 0
      %p48 = por %p46, %p47
      %p49 = scmp.ne.s32.totalorder %s35, %s36
      %p50 = scmp.eq.s32.totalorder %s28, 1
      %p51 = por %p49, %p50
      %p53 = scmp.ne.s32.totalorder %s36, %s52
      %p54 = scmp.eq.s32.totalorder %s28, 0
      %p55 = por %p53, %p54
      %s56 = ssub.s32 %s22, %s29
      %p57 = scmp.eq.s32.totalorder %s56, 0
      %s59 = sadd.s32 %s58, 1
      %s60 = scalar_select %p57, %s58, %s59
      %p63 = pneg %p57
      %p64 = scmp.eq.s32.totalorder %s22, 1
      %p65 = por %p63, %p64
      %p66 = scmp.ne.s32.totalorder %s58, %s61
      %p67 = scmp.eq.s32.totalorder %s22, 0
      %p68 = por %p66, %p67
      %p69 = scmp.ne.s32.totalorder %s58, %s61
      %p70 = scmp.eq.s32.totalorder %s27, 1
      %p71 = por %p69, %p70
      %p72 = scmp.ne.s32.totalorder %s61, %s62
      %p73 = scmp.eq.s32.totalorder %s27, 0
      %p74 = por %p72, %p73
      %p75 = scmp.ne.s32.totalorder %s61, %s62
      %p76 = scmp.eq.s32.totalorder %s28, 1
      %p77 = por %p75, %p76
      %p79 = scmp.ne.s32.totalorder %s62, %s78
      %p80 = scmp.eq.s32.totalorder %s28, 0
      %p81 = por %p79, %p80
      %s82 = ssub.s32 %s22, %s29
      %p83 = scmp.eq.s32.totalorder %s82, 0
      %s85 = sadd.s32 %s84, 1
      %s86 = scalar_select %p83, %s84, %s85
      %p89 = pneg %p83
      %p90 = scmp.eq.s32.totalorder %s22, 1
      %p91 = por %p89, %p90
      %p92 = scmp.ne.s32.totalorder %s84, %s87
      %p93 = scmp.eq.s32.totalorder %s22, 0
      %p94 = por %p92, %p93
      %p95 = scmp.ne.s32.totalorder %s84, %s87
      %p96 = scmp.eq.s32.totalorder %s27, 1
      %p97 = por %p95, %p96
      %p98 = scmp.ne.s32.totalorder %s87, %s88
      %p99 = scmp.eq.s32.totalorder %s27, 0
      %p100 = por %p98, %p99
      %p101 = scmp.ne.s32.totalorder %s87, %s88
      %p102 = scmp.eq.s32.totalorder %s28, 1
      %p103 = por %p101, %p102
      %p105 = scmp.ne.s32.totalorder %s88, %s104
      %p106 = scmp.eq.s32.totalorder %s28, 0
      %p107 = por %p105, %p106
      %s108 = ssub.s32 %s22, %s29
      %p109 = scmp.eq.s32.totalorder %s108, 0
      %s111 = sadd.s32 %s110, 1
      %s112 = scalar_select %p109, %s110, %s111
      %p115 = pneg %p109
      %p116 = scmp.eq.s32.totalorder %s22, 1
      %p117 = por %p115, %p116
      %p118 = scmp.ne.s32.totalorder %s110, %s113
      %p119 = scmp.eq.s32.totalorder %s22, 0
      %p120 = por %p118, %p119
      %p121 = scmp.ne.s32.totalorder %s110, %s113
      %p122 = scmp.eq.s32.totalorder %s27, 1
      %p123 = por %p121, %p122
      %p124 = scmp.ne.s32.totalorder %s113, %s114
      %p125 = scmp.eq.s32.totalorder %s27, 0
      %p126 = por %p124, %p125
      %p127 = scmp.ne.s32.totalorder %s113, %s114
      %p128 = scmp.eq.s32.totalorder %s28, 1
      %p129 = por %p127, %p128
      %p131 = scmp.ne.s32.totalorder %s114, %s130
      %p132 = scmp.eq.s32.totalorder %s28, 0
      %p133 = por %p131, %p132
      %s134 = ssub.s32 %s22, %s29
      %p135 = scmp.eq.s32.totalorder %s134, 0
      %s137 = sadd.s32 %s136, 1
      %s138 = scalar_select %p135, %s136, %s137
      %p141 = pneg %p135
      %p142 = scmp.eq.s32.totalorder %s22, 1
      %p143 = por %p141, %p142
      %p144 = scmp.ne.s32.totalorder %s136, %s139
      %p145 = scmp.eq.s32.totalorder %s22, 0
      %p146 = por %p144, %p145
      %p147 = scmp.ne.s32.totalorder %s136, %s139
      %p148 = scmp.eq.s32.totalorder %s27, 1
      %p149 = por %p147, %p148
      %p150 = scmp.ne.s32.totalorder %s139, %s140
      %p151 = scmp.eq.s32.totalorder %s27, 0
      %p152 = por %p150, %p151
      %p153 = scmp.ne.s32.totalorder %s139, %s140
      %p154 = scmp.eq.s32.totalorder %s28, 1
      %p155 = por %p153, %p154
      %p157 = scmp.ne.s32.totalorder %s140, %s156
      %p158 = scmp.eq.s32.totalorder %s28, 0
      %p159 = por %p157, %p158
      %p160 = scmp.le.s32.totalorder 1, %s22
      %p161 = scmp.lt.s32.totalorder %s22, 3
      %p162 = pnand %p160, %p161
      %p163 = pneg %p162
      // Predicated region
      $region9: #{tpu_custom_call.1} parent=5 // pred_check
        _
      $region10: #{tpu_custom_call.1} parent=5 // pred_check_branch
        %165 = sbr.rel (%p162) target = $region12
      $region11: #{tpu_custom_call.1} parent=5 // pred_region
        %s166 = ssub.s32 %s22, 1
      $region12: #{tpu_custom_call.1} parent=5 // pred_fallthru
        _
      %p167 = scmp.lt.s32.totalorder %s22, 2
      // Predicated region
      $region13: #{tpu_custom_call.1} parent=5 // pred_check
        %p168 = pneg %p167
      $region14: #{tpu_custom_call.1} parent=5 // pred_check_branch
        %170 = sbr.rel (%p168) target = $region16
      $region15: #{tpu_custom_call.1} parent=5 // pred_region
        // Predicated region
        $region17: #{tpu_custom_call.1} parent=15 // pred_check
          %p171 = pneg %p42
        $region18: #{tpu_custom_call.1} parent=15 // pred_check_branch
          %173 = sbr.rel (%p171) target = $region20
        $region19: #{tpu_custom_call.1} parent=15 // pred_region
          %s174 = sand.u32 %s32, 1
          %s175 = scalar_lea.sflag [#allocation3], %s174
          %s176 = sand.u32 %s32, 1
          %s177 = smul.addr %s176, 64
          %s178 = scalar_lea.vmem [#allocation2], %s177
          %s180 = ssub.s32 1024, 1024
          %181 = vsyncadd %s175, %s180
          %s182 = smul.addr %s22, 8
          %s183 = smul.addr %s182, 128
          %s184 = scalar_lea.hbm %s0, %s183
          %s185 = sshll.u32 %s178, 4
          %s186 = int_to_ptr.vmem [resolvable:$true] %s185
          %191 = dma.hbm_to_vmem [thread:$0]  %s184, 1024, %s186, %s175, 128, 128, 8
        $region20: #{tpu_custom_call.1} parent=15 // pred_fallthru
          _
        // Predicated region
        $region21: #{tpu_custom_call.1} parent=15 // pred_check
          %p192 = pneg %p68
        $region22: #{tpu_custom_call.1} parent=15 // pred_check_branch
          %194 = sbr.rel (%p192) target = $region24
        $region23: #{tpu_custom_call.1} parent=15 // pred_region
          %s195 = sand.u32 %s22, 1
          %s196 = scalar_lea.sflag [#allocation6], %s195
          %s197 = sand.u32 %s58, 1
          %s198 = smul.addr %s197, 8
          %s199 = scalar_lea.vmem [#allocation5], %s198
          %s201 = ssub.s32 128, 128
          %202 = vsyncadd %s196, %s201
          %s203 = smul.addr %s22, 128
          %s204 = scalar_lea.hbm %s1, %s203
          %s206 = sshll.u32 %s199, 4
          %s207 = int_to_ptr.vmem [resolvable:$true] %s206
          %209 = dma.hbm_to_vmem [thread:$0]  %s204, 128, %s207, %s196
        $region24: #{tpu_custom_call.1} parent=15 // pred_fallthru
          _
        // Predicated region
        $region25: #{tpu_custom_call.1} parent=15 // pred_check
          %p210 = pneg %p94
        $region26: #{tpu_custom_call.1} parent=15 // pred_check_branch
          %212 = sbr.rel (%p210) target = $region28
        $region27: #{tpu_custom_call.1} parent=15 // pred_region
          %s213 = sand.u32 %s22, 1
          %s214 = scalar_lea.sflag [#allocation6], %s213
          %s215 = sand.u32 %s84, 1
          %s216 = smul.addr %s215, 64
          %s217 = scalar_lea.vmem [#allocation7], %s216
          %s219 = ssub.s32 1024, 1024
          %220 = vsyncadd %s214, %s219
          %s221 = smul.addr %s22, 8
          %s222 = smul.addr %s221, 128
          %s223 = scalar_lea.hbm %s2, %s222
          %s224 = sshll.u32 %s217, 4
          %s225 = int_to_ptr.vmem [resolvable:$true] %s224
          %230 = dma.hbm_to_vmem [thread:$0]  %s223, 1024, %s225, %s214, 128, 128, 8
        $region28: #{tpu_custom_call.1} parent=15 // pred_fallthru
          _
        // Predicated region
        $region29: #{tpu_custom_call.1} parent=15 // pred_check
          %p231 = pneg %p120
        $region30: #{tpu_custom_call.1} parent=15 // pred_check_branch
          %233 = sbr.rel (%p231) target = $region32
        $region31: #{tpu_custom_call.1} parent=15 // pred_region
          %s234 = sand.u32 %s110, 1
          %s235 = scalar_lea.sflag [#allocation9], %s234
          %s236 = sand.u32 %s110, 1
          %s237 = smul.addr %s236, 64
          %s238 = scalar_lea.vmem [#allocation8], %s237
          %s240 = ssub.s32 1024, 1024
          %241 = vsyncadd %s235, %s240
          %s242 = smul.addr %s22, 8
          %s243 = smul.addr %s242, 128
          %s244 = scalar_lea.hbm %s3, %s243
          %s245 = sshll.u32 %s238, 4
          %s246 = int_to_ptr.vmem [resolvable:$true] %s245
          %251 = dma.hbm_to_vmem [thread:$0]  %s244, 1024, %s246, %s235, 128, 128, 8
        $region32: #{tpu_custom_call.1} parent=15 // pred_fallthru
          _
      $region16: #{tpu_custom_call.1} parent=5 // pred_fallthru
        _
      %p252 = scmp.le.s32.totalorder 1, %s22
      %p253 = scmp.lt.s32.totalorder %s22, 3
      %p254 = pnand %p252, %p253
      %p255 = pneg %p254
      // Predicated region
      $region33: #{tpu_custom_call.1} parent=5 // pred_check
        _
      $region34: #{tpu_custom_call.1} parent=5 // pred_check_branch
        %257 = sbr.rel (%p254) target = $region36
      $region35: #{tpu_custom_call.1} parent=5 // pred_region
        %s258 = ssub.s32 %s22, 1
        %s259 = sand.u32 %s35, 1
        %s260 = scalar_lea.sflag [#allocation3], %s259
        %s261 = sand.u32 %s35, 1
        %s262 = smul.addr %s261, 64
        %s263 = scalar_lea.vmem [#allocation2], %s262
        // Predicated region
        $region37: #{tpu_custom_call.1} parent=35 // pred_check
          %p264 = pneg %p48
        $region38: #{tpu_custom_call.1} parent=35 // pred_check_branch
          %266 = sbr.rel (%p264) target = $region40
        $region39: #{tpu_custom_call.1} parent=35 // pred_region
          %267 = dma.done %s260, 1024
        $region40: #{tpu_custom_call.1} parent=35 // pred_fallthru
          _
        %s268 = sand.u32 %s27, 1
        %s269 = scalar_lea.sflag [#allocation6], %s268
        %s270 = sand.u32 %s61, 1
        %s271 = smul.addr %s270, 8
        %s272 = scalar_lea.vmem [#allocation5], %s271
        // Predicated region
        $region41: #{tpu_custom_call.1} parent=35 // pred_check
          %p273 = pneg %p74
        $region42: #{tpu_custom_call.1} parent=35 // pred_check_branch
          %275 = sbr.rel (%p273) target = $region44
        $region43: #{tpu_custom_call.1} parent=35 // pred_region
          %276 = dma.done %s269, 128
        $region44: #{tpu_custom_call.1} parent=35 // pred_fallthru
          _
        %s277 = sand.u32 %s27, 1
        %s278 = scalar_lea.sflag [#allocation6], %s277
        %s279 = sand.u32 %s87, 1
        %s280 = smul.addr %s279, 64
        %s281 = scalar_lea.vmem [#allocation7], %s280
        // Predicated region
        $region45: #{tpu_custom_call.1} parent=35 // pred_check
          %p282 = pneg %p100
        $region46: #{tpu_custom_call.1} parent=35 // pred_check_branch
          %284 = sbr.rel (%p282) target = $region48
        $region47: #{tpu_custom_call.1} parent=35 // pred_region
          %285 = dma.done %s278, 1024
        $region48: #{tpu_custom_call.1} parent=35 // pred_fallthru
          _
        %s286 = sand.u32 %s113, 1
        %s287 = scalar_lea.sflag [#allocation9], %s286
        %s288 = sand.u32 %s113, 1
        %s289 = smul.addr %s288, 64
        %s290 = scalar_lea.vmem [#allocation8], %s289
        // Predicated region
        $region49: #{tpu_custom_call.1} parent=35 // pred_check
          %p291 = pneg %p126
        $region50: #{tpu_custom_call.1} parent=35 // pred_check_branch
          %293 = sbr.rel (%p291) target = $region52
        $region51: #{tpu_custom_call.1} parent=35 // pred_region
          %294 = dma.done %s287, 1024
        $region52: #{tpu_custom_call.1} parent=35 // pred_fallthru
          _
        %s295 = sand.u32 %s35, 1
        %s296 = scalar_lea.sflag [#allocation3], %s295
        %s297 = sand.u32 %s35, 1
        %s298 = smul.addr %s297, 64
        %s299 = scalar_lea.vmem [#allocation2], %s298
        %p300 = pneg %p48
        %p301 = pneg %p45
        %s302 = sand.u32 %s27, 1
        %s303 = scalar_lea.sflag [#allocation6], %s302
        %s304 = sand.u32 %s61, 1
        %s305 = smul.addr %s304, 8
        %s306 = scalar_lea.vmem [#allocation5], %s305
        %p307 = pneg %p74
        %p308 = pneg %p71
        %s309 = sand.u32 %s27, 1
        %s310 = scalar_lea.sflag [#allocation6], %s309
        %s311 = sand.u32 %s87, 1
        %s312 = smul.addr %s311, 64
        %s313 = scalar_lea.vmem [#allocation7], %s312
        %p314 = pneg %p100
        %p315 = pneg %p97
        %s316 = sand.u32 %s113, 1
        %s317 = scalar_lea.sflag [#allocation9], %s316
        %s318 = sand.u32 %s113, 1
        %s319 = smul.addr %s318, 64
        %s320 = scalar_lea.vmem [#allocation8], %s319
        %p321 = pneg %p126
        %p322 = pneg %p123
        %p323 = pneg %p152
        %p324 = pneg %p149
        %s325 = sand.u32 %s139, 1
        %s326 = scalar_lea.sflag [#allocation4], %s325
        %s327 = sand.u32 %s139, 1
        %s328 = smul.addr %s327, 8
        %s329 = scalar_lea.vmem [#allocation10], %s328
        %v330 = vld [vmem:[%s263] sm:$0xff]
        %v331 = vld [vmem:[%s263 + $0x8] sm:$0xff]
        %v332 = vld [vmem:[%s263 + $0x10] sm:$0xff]
        %v333 = vld [vmem:[%s263 + $0x18] sm:$0xff]
        %v334 = vld [vmem:[%s263 + $0x20] sm:$0xff]
        %v335 = vld [vmem:[%s263 + $0x28] sm:$0xff]
        %v336 = vld [vmem:[%s263 + $0x30] sm:$0xff]
        %v337 = vld [vmem:[%s263 + $0x38] sm:$0xff]
        %v338 = vld [vmem:[%s272] sm:$0xff]
        %v339 = vld [vmem:[%s281] sm:$0xff]
        %v340 = vld [vmem:[%s281 + $0x8] sm:$0xff]
        %v341 = vld [vmem:[%s281 + $0x10] sm:$0xff]
        %v342 = vld [vmem:[%s281 + $0x18] sm:$0xff]
        %v343 = vld [vmem:[%s281 + $0x20] sm:$0xff]
        %v344 = vld [vmem:[%s281 + $0x28] sm:$0xff]
        %v345 = vld [vmem:[%s281 + $0x30] sm:$0xff]
        %v346 = vld [vmem:[%s281 + $0x38] sm:$0xff]
        %v347 = vld [vmem:[%s290] sm:$0xff]
        %v348 = vld [vmem:[%s290 + $0x8] sm:$0xff]
        %v349 = vld [vmem:[%s290 + $0x10] sm:$0xff]
        %v350 = vld [vmem:[%s290 + $0x18] sm:$0xff]
        %v351 = vld [vmem:[%s290 + $0x20] sm:$0xff]
        %v352 = vld [vmem:[%s290 + $0x28] sm:$0xff]
        %v353 = vld [vmem:[%s290 + $0x30] sm:$0xff]
        %v354 = vld [vmem:[%s290 + $0x38] sm:$0xff]
        %v355 = vlaneseq
        %v356 = vshrl.u32 %v355, 7
        %v357 = vlaneseq
        %v358 = vand.u32 %v357, 127
        %v359 = vmul.u32 %v356, 128
        %v360 = vadd.s32 %v359, %v358
        %vm361 = vcmp.lt.s32.totalorder %v360, 64
        %vm362 = vcmp.gt.s32.totalorder %v338, 0
        %v363 = vmax.f32 %v330, %v334
        %v364 = vmax.f32 %v331, %v335
        %v365 = vmax.f32 %v332, %v336
        %v366 = vmax.f32 %v333, %v337
        %v367 = vmax.f32 %v363, %v364
        %v368 = vmax.f32 %v365, %v366
        %v369 = vmax.f32 %v367, %v368
        %v370 = vsub.f32 %v330, %v369
        %v371 = vsub.f32 %v331, %v369
        %v372 = vsub.f32 %v332, %v369
        %v373 = vsub.f32 %v333, %v369
        %v374 = vsub.f32 %v334, %v369
        %v375 = vsub.f32 %v335, %v369
        %v376 = vsub.f32 %v336, %v369
        %v377 = vsub.f32 %v337, %v369
        %v378 = vmul.f32 %v370, 1.442695
        %v379 = vpow.pop %v378
        %v380 = vmul.f32 %v371, 1.442695
        %v381 = vpow.pop %v380
        %v382 = vmul.f32 %v372, 1.442695
        %v383 = vpow.pop %v382
        %v384 = vmul.f32 %v373, 1.442695
        %v385 = vpow.pop %v384
        %v386 = vmul.f32 %v374, 1.442695
        %v387 = vpow.pop %v386
        %v388 = vmul.f32 %v375, 1.442695
        %v389 = vpow.pop %v388
        %v390 = vmul.f32 %v376, 1.442695
        %v391 = vpow.pop %v390
        %v392 = vmul.f32 %v377, 1.442695
        %v393 = vpow.pop %v392
        %v394 = vadd.f32 %v379, %v381
        %v395 = vadd.f32 %v394, %v383
        %v396 = vadd.f32 %v395, %v385
        %v397 = vadd.f32 %v396, %v387
        %v398 = vadd.f32 %v397, %v389
        %v399 = vadd.f32 %v398, %v391
        %v400 = vadd.f32 %v399, %v393
        %v401 = vlog2.pop %v400
        %v402 = vmul.f32 %v401, 0.6931472
        %v403 = vadd.f32 %v369, %v402
        %v404 = vsub.f32 %v403, %v330
        %vm405 = vcmp.eq.s32.totalorder %v338, 0
        %vm406 = vcmp.eq.s32.totalorder %v338, 1
        %vm407 = vcmp.eq.s32.totalorder %v338, 2
        %vm408 = vcmp.eq.s32.totalorder %v338, 3
        %vm409 = vcmp.eq.s32.totalorder %v338, 4
        %vm410 = vcmp.eq.s32.totalorder %v338, 5
        %vm411 = vcmp.eq.s32.totalorder %v338, 6
        %vm412 = vcmp.eq.s32.totalorder %v338, 7
        %v413 = vsel %vm405, %v330, 0.0
        %v414 = vsel %vm406, %v331, 0.0
        %v415 = vsel %vm407, %v332, 0.0
        %v416 = vsel %vm408, %v333, 0.0
        %v417 = vsel %vm409, %v334, 0.0
        %v418 = vsel %vm410, %v335, 0.0
        %v419 = vsel %vm411, %v336, 0.0
        %v420 = vsel %vm412, %v337, 0.0
        %v421 = vadd.f32 %v413, %v414
        %v422 = vadd.f32 %v421, %v415
        %v423 = vadd.f32 %v422, %v416
        %v424 = vadd.f32 %v423, %v417
        %v425 = vadd.f32 %v424, %v418
        %v426 = vadd.f32 %v425, %v419
        %v427 = vadd.f32 %v426, %v420
        %v428 = vsub.f32 %v403, %v427
        %v429 = vsel %vm362, 1.0, 0.0
        %430 = vadd.xlane.f32.xlu0 %v429
        %v431 = vpop.xlane.xlu0 %430
        %v432 = vrot.slane %v431, 4
        %v433 = vadd.f32 %v431, %v432
        %v434 = vrot.slane %v433, 2
        %v435 = vadd.f32 %v433, %v434
        %v436 = vrot.slane %v435, 1
        %v437 = vadd.f32 %v435, %v436
        %s438 = vtos %v437
        %v439 = vstv %s438
        %v440 = vmul.f32 %v439, 3.0
        %vm441 = vmxor %vm361, 1
        %vm442 = vmor %vm362, %vm441
        %v443 = vsel %vm442, -1e+30, %v404
        %vm445 = vcmp.lt.s32.totalorder %v443, 0
        %v446 = vxor.u32 %v443, 2147483647
        %v447 = vsel %vm445, %v446, %v443
        %v448 = vshra.s32 %v447, 16
        %v449 = vand.u32 %v448, 65535
        %v450 = vxor.u32 %v449, 32768
        %v451 = vand.u32 %v447, 65535
        %vm452 = vcmp.ge.s32.totalorder %v450, 32768
        %v453 = vsel %vm452, 1.0, 0.0
        %454 = vadd.xlane.f32.xlu0 %v453
        %v455 = vpop.xlane.xlu0 %454
        %v456 = vrot.slane %v455, 4
        %v457 = vadd.f32 %v455, %v456
        %v458 = vrot.slane %v457, 2
        %v459 = vadd.f32 %v457, %v458
        %v460 = vrot.slane %v459, 1
        %v461 = vadd.f32 %v459, %v460
        %s462 = vtos %v461
        %v463 = vstv %s462
        %vm464 = vcmp.ge.f32.partialorder %v463, %v440
        %v465 = vsel %vm464, 32768, 0
        %v466 = vor.u32 %v465, 16384
        %vm467 = vcmp.ge.s32.totalorder %v450, %v466
        %v468 = vsel %vm467, 1.0, 0.0
        %469 = vadd.xlane.f32.xlu0 %v468
        %v470 = vpop.xlane.xlu0 %469
        %v471 = vrot.slane %v470, 4
        %v472 = vadd.f32 %v470, %v471
        %v473 = vrot.slane %v472, 2
        %v474 = vadd.f32 %v472, %v473
        %v475 = vrot.slane %v474, 1
        %v476 = vadd.f32 %v474, %v475
        %s477 = vtos %v476
        %v478 = vstv %s477
        %vm479 = vcmp.ge.f32.partialorder %v478, %v440
        %v480 = vsel %vm479, %v466, %v465
        %v481 = vor.u32 %v480, 8192
        %vm482 = vcmp.ge.s32.totalorder %v450, %v481
        %v483 = vsel %vm482, 1.0, 0.0
        %484 = vadd.xlane.f32.xlu0 %v483
        %v485 = vpop.xlane.xlu0 %484
        %v486 = vrot.slane %v485, 4
        %v487 = vadd.f32 %v485, %v486
        %v488 = vrot.slane %v487, 2
        %v489 = vadd.f32 %v487, %v488
        %v490 = vrot.slane %v489, 1
        %v491 = vadd.f32 %v489, %v490
        %s492 = vtos %v491
        %v493 = vstv %s492
        %vm494 = vcmp.ge.f32.partialorder %v493, %v440
        %v495 = vsel %vm494, %v481, %v480
        %v496 = vor.u32 %v495, 4096
        %vm497 = vcmp.ge.s32.totalorder %v450, %v496
        %v498 = vsel %vm497, 1.0, 0.0
        %499 = vadd.xlane.f32.xlu0 %v498
        %v500 = vpop.xlane.xlu0 %499
        %v501 = vrot.slane %v500, 4
        %v502 = vadd.f32 %v500, %v501
        %v503 = vrot.slane %v502, 2
        %v504 = vadd.f32 %v502, %v503
        %v505 = vrot.slane %v504, 1
        %v506 = vadd.f32 %v504, %v505
        %s507 = vtos %v506
        %v508 = vstv %s507
        %vm509 = vcmp.ge.f32.partialorder %v508, %v440
        %v510 = vsel %vm509, %v496, %v495
        %v511 = vor.u32 %v510, 2048
        %vm512 = vcmp.ge.s32.totalorder %v450, %v511
        %v513 = vsel %vm512, 1.0, 0.0
        %514 = vadd.xlane.f32.xlu0 %v513
        %v515 = vpop.xlane.xlu0 %514
        %v516 = vrot.slane %v515, 4
        %v517 = vadd.f32 %v515, %v516
        %v518 = vrot.slane %v517, 2
        %v519 = vadd.f32 %v517, %v518
        %v520 = vrot.slane %v519, 1
        %v521 = vadd.f32 %v519, %v520
        %s522 = vtos %v521
        %v523 = vstv %s522
        %vm524 = vcmp.ge.f32.partialorder %v523, %v440
        %v525 = vsel %vm524, %v511, %v510
        %v526 = vor.u32 %v525, 1024
        %vm527 = vcmp.ge.s32.totalorder %v450, %v526
        %v528 = vsel %vm527, 1.0, 0.0
        %529 = vadd.xlane.f32.xlu0 %v528
        %v530 = vpop.xlane.xlu0 %529
        %v531 = vrot.slane %v530, 4
        %v532 = vadd.f32 %v530, %v531
        %v533 = vrot.slane %v532, 2
        %v534 = vadd.f32 %v532, %v533
        %v535 = vrot.slane %v534, 1
        %v536 = vadd.f32 %v534, %v535
        %s537 = vtos %v536
        %v538 = vstv %s537
        %vm539 = vcmp.ge.f32.partialorder %v538, %v440
        %v540 = vsel %vm539, %v526, %v525
        %v541 = vor.u32 %v540, 512
        %vm542 = vcmp.ge.s32.totalorder %v450, %v541
        %v543 = vsel %vm542, 1.0, 0.0
        %544 = vadd.xlane.f32.xlu0 %v543
        %v545 = vpop.xlane.xlu0 %544
        %v546 = vrot.slane %v545, 4
        %v547 = vadd.f32 %v545, %v546
        %v548 = vrot.slane %v547, 2
        %v549 = vadd.f32 %v547, %v548
        %v550 = vrot.slane %v549, 1
        %v551 = vadd.f32 %v549, %v550
        %s552 = vtos %v551
        %v553 = vstv %s552
        %vm554 = vcmp.ge.f32.partialorder %v553, %v440
        %v555 = vsel %vm554, %v541, %v540
        %v556 = vor.u32 %v555, 256
        %vm557 = vcmp.ge.s32.totalorder %v450, %v556
        %v558 = vsel %vm557, 1.0, 0.0
        %559 = vadd.xlane.f32.xlu0 %v558
        %v560 = vpop.xlane.xlu0 %559
        %v561 = vrot.slane %v560, 4
        %v562 = vadd.f32 %v560, %v561
        %v563 = vrot.slane %v562, 2
        %v564 = vadd.f32 %v562, %v563
        %v565 = vrot.slane %v564, 1
        %v566 = vadd.f32 %v564, %v565
        %s567 = vtos %v566
        %v568 = vstv %s567
        %vm569 = vcmp.ge.f32.partialorder %v568, %v440
        %v570 = vsel %vm569, %v556, %v555
        %v571 = vor.u32 %v570, 128
        %vm572 = vcmp.ge.s32.totalorder %v450, %v571
        %v573 = vsel %vm572, 1.0, 0.0
        %574 = vadd.xlane.f32.xlu0 %v573
        %v575 = vpop.xlane.xlu0 %574
        %v576 = vrot.slane %v575, 4
        %v577 = vadd.f32 %v575, %v576
        %v578 = vrot.slane %v577, 2
        %v579 = vadd.f32 %v577, %v578
        %v580 = vrot.slane %v579, 1
        %v581 = vadd.f32 %v579, %v580
        %s582 = vtos %v581
        %v583 = vstv %s582
        %vm584 = vcmp.ge.f32.partialorder %v583, %v440
        %v585 = vsel %vm584, %v571, %v570
        %v586 = vor.u32 %v585, 64
        %vm587 = vcmp.ge.s32.totalorder %v450, %v586
        %v588 = vsel %vm587, 1.0, 0.0
        %589 = vadd.xlane.f32.xlu0 %v588
        %v590 = vpop.xlane.xlu0 %589
        %v591 = vrot.slane %v590, 4
        %v592 = vadd.f32 %v590, %v591
        %v593 = vrot.slane %v592, 2
        %v594 = vadd.f32 %v592, %v593
        %v595 = vrot.slane %v594, 1
        %v596 = vadd.f32 %v594, %v595
        %s597 = vtos %v596
        %v598 = vstv %s597
        %vm599 = vcmp.ge.f32.partialorder %v598, %v440
        %v600 = vsel %vm599, %v586, %v585
        %v601 = vor.u32 %v600, 32
        %vm602 = vcmp.ge.s32.totalorder %v450, %v601
        %v603 = vsel %vm602, 1.0, 0.0
        %604 = vadd.xlane.f32.xlu0 %v603
        %v605 = vpop.xlane.xlu0 %604
        %v606 = vrot.slane %v605, 4
        %v607 = vadd.f32 %v605, %v606
        %v608 = vrot.slane %v607, 2
        %v609 = vadd.f32 %v607, %v608
        %v610 = vrot.slane %v609, 1
        %v611 = vadd.f32 %v609, %v610
        %s612 = vtos %v611
        %v613 = vstv %s612
        %vm614 = vcmp.ge.f32.partialorder %v613, %v440
        %v615 = vsel %vm614, %v601, %v600
        %v616 = vor.u32 %v615, 16
        %vm617 = vcmp.ge.s32.totalorder %v450, %v616
        %v618 = vsel %vm617, 1.0, 0.0
        %619 = vadd.xlane.f32.xlu0 %v618
        %v620 = vpop.xlane.xlu0 %619
        %v621 = vrot.slane %v620, 4
        %v622 = vadd.f32 %v620, %v621
        %v623 = vrot.slane %v622, 2
        %v624 = vadd.f32 %v622, %v623
        %v625 = vrot.slane %v624, 1
        %v626 = vadd.f32 %v624, %v625
        %s627 = vtos %v626
        %v628 = vstv %s627
        %vm629 = vcmp.ge.f32.partialorder %v628, %v440
        %v630 = vsel %vm629, %v616, %v615
        %v631 = vor.u32 %v630, 8
        %vm632 = vcmp.ge.s32.totalorder %v450, %v631
        %v633 = vsel %vm632, 1.0, 0.0
        %634 = vadd.xlane.f32.xlu0 %v633
        %v635 = vpop.xlane.xlu0 %634
        %v636 = vrot.slane %v635, 4
        %v637 = vadd.f32 %v635, %v636
        %v638 = vrot.slane %v637, 2
        %v639 = vadd.f32 %v637, %v638
        %v640 = vrot.slane %v639, 1
        %v641 = vadd.f32 %v639, %v640
        %s642 = vtos %v641
        %v643 = vstv %s642
        %vm644 = vcmp.ge.f32.partialorder %v643, %v440
        %v645 = vsel %vm644, %v631, %v630
        %v646 = vor.u32 %v645, 4
        %vm647 = vcmp.ge.s32.totalorder %v450, %v646
        %v648 = vsel %vm647, 1.0, 0.0
        %649 = vadd.xlane.f32.xlu0 %v648
        %v650 = vpop.xlane.xlu0 %649
        %v651 = vrot.slane %v650, 4
        %v652 = vadd.f32 %v650, %v651
        %v653 = vrot.slane %v652, 2
        %v654 = vadd.f32 %v652, %v653
        %v655 = vrot.slane %v654, 1
        %v656 = vadd.f32 %v654, %v655
        %s657 = vtos %v656
        %v658 = vstv %s657
        %vm659 = vcmp.ge.f32.partialorder %v658, %v440
        %v660 = vsel %vm659, %v646, %v645
        %v661 = vor.u32 %v660, 2
        %vm662 = vcmp.ge.s32.totalorder %v450, %v661
        %v663 = vsel %vm662, 1.0, 0.0
        %664 = vadd.xlane.f32.xlu0 %v663
        %v665 = vpop.xlane.xlu0 %664
        %v666 = vrot.slane %v665, 4
        %v667 = vadd.f32 %v665, %v666
        %v668 = vrot.slane %v667, 2
        %v669 = vadd.f32 %v667, %v668
        %v670 = vrot.slane %v669, 1
        %v671 = vadd.f32 %v669, %v670
        %s672 = vtos %v671
        %v673 = vstv %s672
        %vm674 = vcmp.ge.f32.partialorder %v673, %v440
        %v675 = vsel %vm674, %v661, %v660
        %v676 = vor.u32 %v675, 1
        %vm677 = vcmp.ge.s32.totalorder %v450, %v676
        %v678 = vsel %vm677, 1.0, 0.0
        %679 = vadd.xlane.f32.xlu0 %v678
        %v680 = vpop.xlane.xlu0 %679
        %v681 = vrot.slane %v680, 4
        %v682 = vadd.f32 %v680, %v681
        %v683 = vrot.slane %v682, 2
        %v684 = vadd.f32 %v682, %v683
        %v685 = vrot.slane %v684, 1
        %v686 = vadd.f32 %v684, %v685
        %s687 = vtos %v686
        %v688 = vstv %s687
        %vm689 = vcmp.ge.f32.partialorder %v688, %v440
        %v690 = vsel %vm689, %v676, %v675
        %vm691 = vcmp.eq.s32.totalorder %v450, %v690
        %vm692 = vcmp.gt.s32.totalorder %v450, %v690
        %v693 = vsel %vm692, 1.0, 0.0
        %694 = vadd.xlane.f32.xlu0 %v693
        %v695 = vpop.xlane.xlu0 %694
        %v696 = vrot.slane %v695, 4
        %v697 = vadd.f32 %v695, %v696
        %v698 = vrot.slane %v697, 2
        %v699 = vadd.f32 %v697, %v698
        %v700 = vrot.slane %v699, 1
        %v701 = vadd.f32 %v699, %v700
        %s702 = vtos %v701
        %v703 = vstv %s702
        %v704 = vsub.f32 %v440, %v703
        %vm705 = vcmp.ge.s32.totalorder %v451, 32768
        %vm706 = vmand %vm705, %vm691
        %v707 = vsel %vm706, 1.0, 0.0
        %708 = vadd.xlane.f32.xlu0 %v707
        %v709 = vpop.xlane.xlu0 %708
        %v710 = vrot.slane %v709, 4
        %v711 = vadd.f32 %v709, %v710
        %v712 = vrot.slane %v711, 2
        %v713 = vadd.f32 %v711, %v712
        %v714 = vrot.slane %v713, 1
        %v715 = vadd.f32 %v713, %v714
        %s716 = vtos %v715
        %v717 = vstv %s716
        %vm718 = vcmp.ge.f32.partialorder %v717, %v704
        %v719 = vsel %vm718, 32768, 0
        %v720 = vor.u32 %v719, 16384
        %vm721 = vcmp.ge.s32.totalorder %v451, %v720
        %vm722 = vmand %vm721, %vm691
        %v723 = vsel %vm722, 1.0, 0.0
        %724 = vadd.xlane.f32.xlu0 %v723
        %v725 = vpop.xlane.xlu0 %724
        %v726 = vrot.slane %v725, 4
        %v727 = vadd.f32 %v725, %v726
        %v728 = vrot.slane %v727, 2
        %v729 = vadd.f32 %v727, %v728
        %v730 = vrot.slane %v729, 1
        %v731 = vadd.f32 %v729, %v730
        %s732 = vtos %v731
        %v733 = vstv %s732
        %vm734 = vcmp.ge.f32.partialorder %v733, %v704
        %v735 = vsel %vm734, %v720, %v719
        %v736 = vor.u32 %v735, 8192
        %vm737 = vcmp.ge.s32.totalorder %v451, %v736
        %vm738 = vmand %vm737, %vm691
        %v739 = vsel %vm738, 1.0, 0.0
        %740 = vadd.xlane.f32.xlu0 %v739
        %v741 = vpop.xlane.xlu0 %740
        %v742 = vrot.slane %v741, 4
        %v743 = vadd.f32 %v741, %v742
        %v744 = vrot.slane %v743, 2
        %v745 = vadd.f32 %v743, %v744
        %v746 = vrot.slane %v745, 1
        %v747 = vadd.f32 %v745, %v746
        %s748 = vtos %v747
        %v749 = vstv %s748
        %vm750 = vcmp.ge.f32.partialorder %v749, %v704
        %v751 = vsel %vm750, %v736, %v735
        %v752 = vor.u32 %v751, 4096
        %vm753 = vcmp.ge.s32.totalorder %v451, %v752
        %vm754 = vmand %vm753, %vm691
        %v755 = vsel %vm754, 1.0, 0.0
        %756 = vadd.xlane.f32.xlu0 %v755
        %v757 = vpop.xlane.xlu0 %756
        %v758 = vrot.slane %v757, 4
        %v759 = vadd.f32 %v757, %v758
        %v760 = vrot.slane %v759, 2
        %v761 = vadd.f32 %v759, %v760
        %v762 = vrot.slane %v761, 1
        %v763 = vadd.f32 %v761, %v762
        %s764 = vtos %v763
        %v765 = vstv %s764
        %vm766 = vcmp.ge.f32.partialorder %v765, %v704
        %v767 = vsel %vm766, %v752, %v751
        %v768 = vor.u32 %v767, 2048
        %vm769 = vcmp.ge.s32.totalorder %v451, %v768
        %vm770 = vmand %vm769, %vm691
        %v771 = vsel %vm770, 1.0, 0.0
        %772 = vadd.xlane.f32.xlu0 %v771
        %v773 = vpop.xlane.xlu0 %772
        %v774 = vrot.slane %v773, 4
        %v775 = vadd.f32 %v773, %v774
        %v776 = vrot.slane %v775, 2
        %v777 = vadd.f32 %v775, %v776
        %v778 = vrot.slane %v777, 1
        %v779 = vadd.f32 %v777, %v778
        %s780 = vtos %v779
        %v781 = vstv %s780
        %vm782 = vcmp.ge.f32.partialorder %v781, %v704
        %v783 = vsel %vm782, %v768, %v767
        %v784 = vor.u32 %v783, 1024
        %vm785 = vcmp.ge.s32.totalorder %v451, %v784
        %vm786 = vmand %vm785, %vm691
        %v787 = vsel %vm786, 1.0, 0.0
        %788 = vadd.xlane.f32.xlu0 %v787
        %v789 = vpop.xlane.xlu0 %788
        %v790 = vrot.slane %v789, 4
        %v791 = vadd.f32 %v789, %v790
        %v792 = vrot.slane %v791, 2
        %v793 = vadd.f32 %v791, %v792
        %v794 = vrot.slane %v793, 1
        %v795 = vadd.f32 %v793, %v794
        %s796 = vtos %v795
        %v797 = vstv %s796
        %vm798 = vcmp.ge.f32.partialorder %v797, %v704
        %v799 = vsel %vm798, %v784, %v783
        %v800 = vor.u32 %v799, 512
        %vm801 = vcmp.ge.s32.totalorder %v451, %v800
        %vm802 = vmand %vm801, %vm691
        %v803 = vsel %vm802, 1.0, 0.0
        %804 = vadd.xlane.f32.xlu0 %v803
        %v805 = vpop.xlane.xlu0 %804
        %v806 = vrot.slane %v805, 4
        %v807 = vadd.f32 %v805, %v806
        %v808 = vrot.slane %v807, 2
        %v809 = vadd.f32 %v807, %v808
        %v810 = vrot.slane %v809, 1
        %v811 = vadd.f32 %v809, %v810
        %s812 = vtos %v811
        %v813 = vstv %s812
        %vm814 = vcmp.ge.f32.partialorder %v813, %v704
        %v815 = vsel %vm814, %v800, %v799
        %v816 = vor.u32 %v815, 256
        %vm817 = vcmp.ge.s32.totalorder %v451, %v816
        %vm818 = vmand %vm817, %vm691
        %v819 = vsel %vm818, 1.0, 0.0
        %820 = vadd.xlane.f32.xlu0 %v819
        %v821 = vpop.xlane.xlu0 %820
        %v822 = vrot.slane %v821, 4
        %v823 = vadd.f32 %v821, %v822
        %v824 = vrot.slane %v823, 2
        %v825 = vadd.f32 %v823, %v824
        %v826 = vrot.slane %v825, 1
        %v827 = vadd.f32 %v825, %v826
        %s828 = vtos %v827
        %v829 = vstv %s828
        %vm830 = vcmp.ge.f32.partialorder %v829, %v704
        %v831 = vsel %vm830, %v816, %v815
        %v832 = vor.u32 %v831, 128
        %vm833 = vcmp.ge.s32.totalorder %v451, %v832
        %vm834 = vmand %vm833, %vm691
        %v835 = vsel %vm834, 1.0, 0.0
        %836 = vadd.xlane.f32.xlu0 %v835
        %v837 = vpop.xlane.xlu0 %836
        %v838 = vrot.slane %v837, 4
        %v839 = vadd.f32 %v837, %v838
        %v840 = vrot.slane %v839, 2
        %v841 = vadd.f32 %v839, %v840
        %v842 = vrot.slane %v841, 1
        %v843 = vadd.f32 %v841, %v842
        %s844 = vtos %v843
        %v845 = vstv %s844
        %vm846 = vcmp.ge.f32.partialorder %v845, %v704
        %v847 = vsel %vm846, %v832, %v831
        %v848 = vor.u32 %v847, 64
        %vm849 = vcmp.ge.s32.totalorder %v451, %v848
        %vm850 = vmand %vm849, %vm691
        %v851 = vsel %vm850, 1.0, 0.0
        %852 = vadd.xlane.f32.xlu0 %v851
        %v853 = vpop.xlane.xlu0 %852
        %v854 = vrot.slane %v853, 4
        %v855 = vadd.f32 %v853, %v854
        %v856 = vrot.slane %v855, 2
        %v857 = vadd.f32 %v855, %v856
        %v858 = vrot.slane %v857, 1
        %v859 = vadd.f32 %v857, %v858
        %s860 = vtos %v859
        %v861 = vstv %s860
        %vm862 = vcmp.ge.f32.partialorder %v861, %v704
        %v863 = vsel %vm862, %v848, %v847
        %v864 = vor.u32 %v863, 32
        %vm865 = vcmp.ge.s32.totalorder %v451, %v864
        %vm866 = vmand %vm865, %vm691
        %v867 = vsel %vm866, 1.0, 0.0
        %868 = vadd.xlane.f32.xlu0 %v867
        %v869 = vpop.xlane.xlu0 %868
        %v870 = vrot.slane %v869, 4
        %v871 = vadd.f32 %v869, %v870
        %v872 = vrot.slane %v871, 2
        %v873 = vadd.f32 %v871, %v872
        %v874 = vrot.slane %v873, 1
        %v875 = vadd.f32 %v873, %v874
        %s876 = vtos %v875
        %v877 = vstv %s876
        %vm878 = vcmp.ge.f32.partialorder %v877, %v704
        %v879 = vsel %vm878, %v864, %v863
        %v880 = vor.u32 %v879, 16
        %vm881 = vcmp.ge.s32.totalorder %v451, %v880
        %vm882 = vmand %vm881, %vm691
        %v883 = vsel %vm882, 1.0, 0.0
        %884 = vadd.xlane.f32.xlu0 %v883
        %v885 = vpop.xlane.xlu0 %884
        %v886 = vrot.slane %v885, 4
        %v887 = vadd.f32 %v885, %v886
        %v888 = vrot.slane %v887, 2
        %v889 = vadd.f32 %v887, %v888
        %v890 = vrot.slane %v889, 1
        %v891 = vadd.f32 %v889, %v890
        %s892 = vtos %v891
        %v893 = vstv %s892
        %vm894 = vcmp.ge.f32.partialorder %v893, %v704
        %v895 = vsel %vm894, %v880, %v879
        %v896 = vor.u32 %v895, 8
        %vm897 = vcmp.ge.s32.totalorder %v451, %v896
        %vm898 = vmand %vm897, %vm691
        %v899 = vsel %vm898, 1.0, 0.0
        %900 = vadd.xlane.f32.xlu0 %v899
        %v901 = vpop.xlane.xlu0 %900
        %v902 = vrot.slane %v901, 4
        %v903 = vadd.f32 %v901, %v902
        %v904 = vrot.slane %v903, 2
        %v905 = vadd.f32 %v903, %v904
        %v906 = vrot.slane %v905, 1
        %v907 = vadd.f32 %v905, %v906
        %s908 = vtos %v907
        %v909 = vstv %s908
        %vm910 = vcmp.ge.f32.partialorder %v909, %v704
        %v911 = vsel %vm910, %v896, %v895
        %v912 = vor.u32 %v911, 4
        %vm913 = vcmp.ge.s32.totalorder %v451, %v912
        %vm914 = vmand %vm913, %vm691
        %v915 = vsel %vm914, 1.0, 0.0
        %916 = vadd.xlane.f32.xlu0 %v915
        %v917 = vpop.xlane.xlu0 %916
        %v918 = vrot.slane %v917, 4
        %v919 = vadd.f32 %v917, %v918
        %v920 = vrot.slane %v919, 2
        %v921 = vadd.f32 %v919, %v920
        %v922 = vrot.slane %v921, 1
        %v923 = vadd.f32 %v921, %v922
        %s924 = vtos %v923
        %v925 = vstv %s924
        %vm926 = vcmp.ge.f32.partialorder %v925, %v704
        %v927 = vsel %vm926, %v912, %v911
        %v928 = vor.u32 %v927, 2
        %vm929 = vcmp.ge.s32.totalorder %v451, %v928
        %vm930 = vmand %vm929, %vm691
        %v931 = vsel %vm930, 1.0, 0.0
        %932 = vadd.xlane.f32.xlu0 %v931
        %v933 = vpop.xlane.xlu0 %932
        %v934 = vrot.slane %v933, 4
        %v935 = vadd.f32 %v933, %v934
        %v936 = vrot.slane %v935, 2
        %v937 = vadd.f32 %v935, %v936
        %v938 = vrot.slane %v937, 1
        %v939 = vadd.f32 %v937, %v938
        %s940 = vtos %v939
        %v941 = vstv %s940
        %vm942 = vcmp.ge.f32.partialorder %v941, %v704
        %v943 = vsel %vm942, %v928, %v927
        %v944 = vor.u32 %v943, 1
        %vm945 = vcmp.ge.s32.totalorder %v451, %v944
        %vm946 = vmand %vm945, %vm691
        %v947 = vsel %vm946, 1.0, 0.0
        %948 = vadd.xlane.f32.xlu0 %v947
        %v949 = vpop.xlane.xlu0 %948
        %v950 = vrot.slane %v949, 4
        %v951 = vadd.f32 %v949, %v950
        %v952 = vrot.slane %v951, 2
        %v953 = vadd.f32 %v951, %v952
        %v954 = vrot.slane %v953, 1
        %v955 = vadd.f32 %v953, %v954
        %s956 = vtos %v955
        %v957 = vstv %s956
        %vm958 = vcmp.ge.f32.partialorder %v957, %v704
        %v959 = vsel %vm958, %v944, %v943
        %vm960 = vcmp.ge.s32.totalorder %v451, %v959
        %vm961 = vmand %vm691, %vm960
        %vm962 = vmor %vm692, %vm961
        %vm963 = vcmp.ge.f32.partialorder %v440, 1.0
        %v964 = vsel %vm963, 1, 0
        %vm965 = vcmp.eq.s32.totalorder %v964, 1
        %vm966 = vmand %vm962, %vm965
        %vm967 = vmor %vm362, %vm966
        %vm968 = vmand %vm967, %vm361
        %v969 = vsel %vm968, %v428, 0.0
        %970 = vadd.xlane.f32.xlu0 %v969
        %v971 = vpop.xlane.xlu0 %970
        %v972 = vrot.slane %v971, 4
        %v973 = vadd.f32 %v971, %v972
        %v974 = vrot.slane %v973, 2
        %v975 = vadd.f32 %v973, %v974
        %v976 = vrot.slane %v975, 1
        %v977 = vadd.f32 %v975, %v976
        %s978 = vtos %v977
        %v979 = vsub.f32 %v339, %v347
        %v980 = vsub.f32 %v340, %v348
        %v981 = vsub.f32 %v341, %v349
        %v982 = vsub.f32 %v342, %v350
        %v983 = vsub.f32 %v343, %v351
        %v984 = vsub.f32 %v344, %v352
        %v985 = vsub.f32 %v345, %v353
        %v986 = vsub.f32 %v346, %v354
        %v987 = vand.u32 2147483647, %v979
        %v988 = vand.u32 2147483647, %v980
        %v989 = vand.u32 2147483647, %v981
        %v990 = vand.u32 2147483647, %v982
        %v991 = vand.u32 2147483647, %v983
        %v992 = vand.u32 2147483647, %v984
        %v993 = vand.u32 2147483647, %v985
        %v994 = vand.u32 2147483647, %v986
        %vm995 = vcmp.lt.f32.partialorder %v987, 1.0
        %vm996 = vcmp.lt.f32.partialorder %v988, 1.0
        %vm997 = vcmp.lt.f32.partialorder %v989, 1.0
        %vm998 = vcmp.lt.f32.partialorder %v990, 1.0
        %vm999 = vcmp.lt.f32.partialorder %v991, 1.0
        %vm1000 = vcmp.lt.f32.partialorder %v992, 1.0
        %vm1001 = vcmp.lt.f32.partialorder %v993, 1.0
        %vm1002 = vcmp.lt.f32.partialorder %v994, 1.0
        %v1003 = vmul.f32 %v979, 0.5
        %v1004 = vmul.f32 %v980, 0.5
        %v1005 = vmul.f32 %v981, 0.5
        %v1006 = vmul.f32 %v982, 0.5
        %v1007 = vmul.f32 %v983, 0.5
        %v1008 = vmul.f32 %v984, 0.5
        %v1009 = vmul.f32 %v985, 0.5
        %v1010 = vmul.f32 %v986, 0.5
        %v1011 = vmul.f32 %v1003, %v979
        %v1012 = vmul.f32 %v1004, %v980
        %v1013 = vmul.f32 %v1005, %v981
        %v1014 = vmul.f32 %v1006, %v982
        %v1015 = vmul.f32 %v1007, %v983
        %v1016 = vmul.f32 %v1008, %v984
        %v1017 = vmul.f32 %v1009, %v985
        %v1018 = vmul.f32 %v1010, %v986
        %v1019 = vsub.f32 %v987, 0.5
        %v1020 = vsub.f32 %v988, 0.5
        %v1021 = vsub.f32 %v989, 0.5
        %v1022 = vsub.f32 %v990, 0.5
        %v1023 = vsub.f32 %v991, 0.5
        %v1024 = vsub.f32 %v992, 0.5
        %v1025 = vsub.f32 %v993, 0.5
        %v1026 = vsub.f32 %v994, 0.5
        %v1027 = vsel %vm995, %v1011, %v1019
        %v1028 = vsel %vm996, %v1012, %v1020
        %v1029 = vsel %vm997, %v1013, %v1021
        %v1030 = vsel %vm998, %v1014, %v1022
        %v1031 = vsel %vm999, %v1015, %v1023
        %v1032 = vsel %vm1000, %v1016, %v1024
        %v1033 = vsel %vm1001, %v1017, %v1025
        %v1034 = vsel %vm1002, %v1018, %v1026
        %v1035 = vadd.f32 %v1027, %v1028
        %v1036 = vadd.f32 %v1035, %v1029
        %v1037 = vadd.f32 %v1036, %v1030
        %v1038 = vadd.f32 %v1037, %v1031
        %v1039 = vadd.f32 %v1038, %v1032
        %v1040 = vadd.f32 %v1039, %v1033
        %v1041 = vadd.f32 %v1040, %v1034
        %v1042 = vsel %vm362, %v1041, 0.0
        %1043 = vadd.xlane.f32.xlu0 %v1042
        %v1044 = vpop.xlane.xlu0 %1043
        %v1045 = vrot.slane %v1044, 4
        %v1046 = vadd.f32 %v1044, %v1045
        %v1047 = vrot.slane %v1046, 2
        %v1048 = vadd.f32 %v1046, %v1047
        %v1049 = vrot.slane %v1048, 1
        %v1050 = vadd.f32 %v1048, %v1049
        %s1051 = vtos %v1050
        %vm1052 = vcmp.eq.s32.totalorder %v356, 0
        %vm1053 = vcmp.eq.s32.totalorder %v356, 1
        %vm1054 = vcmp.eq.s32.totalorder %v356, 2
        %v1055 = vsel %vm1054, %v439, 0.0
        %v1056 = vstv %s978
        %v1057 = vsel %vm1053, %v1056, %v1055
        %v1058 = vstv %s1051
        %v1059 = vsel %vm1052, %v1058, %v1057
        %1060 = vst [vmem:[%s329] sm:$0xff] %v1059
        %s1061 = sand.u32 %s139, 1
        %s1062 = scalar_lea.sflag [#allocation4], %s1061
        %s1063 = sand.u32 %s139, 1
        %s1064 = smul.addr %s1063, 8
        %s1065 = scalar_lea.vmem [#allocation10], %s1064
        // Predicated region
        $region53: #{tpu_custom_call.1} parent=35 // pred_check
          %p1066 = pneg %p149
        $region54: #{tpu_custom_call.1} parent=35 // pred_check_branch
          %1068 = sbr.rel (%p1066) target = $region56
        $region55: #{tpu_custom_call.1} parent=35 // pred_region
          %s1070 = ssub.s32 128, 128
          %1071 = vsyncadd %s1062, %s1070
          %s1072 = smul.addr %s27, 128
          %s1073 = scalar_lea.hbm %s4, %s1072
          %s1075 = sshll.u32 %s1065, 4
          %s1076 = int_to_ptr.vmem [resolvable:$true] %s1075
          %1078 = dma.vmem_to_hbm [thread:$0]  %s1076, 128, %s1073, %s1062
        $region56: #{tpu_custom_call.1} parent=35 // pred_fallthru
          _
      $region36: #{tpu_custom_call.1} parent=5 // pred_fallthru
        _
      %p1079 = scmp.le.s32.totalorder 2, %s22
      // Predicated region
      $region57: #{tpu_custom_call.1} parent=5 // pred_check
        %p1080 = pneg %p1079
      $region58: #{tpu_custom_call.1} parent=5 // pred_check_branch
        %1082 = sbr.rel (%p1080) target = $region60
      $region59: #{tpu_custom_call.1} parent=5 // pred_region
        %s1083 = ssub.s32 %s22, 2
        // Predicated region
        $region61: #{tpu_custom_call.1} parent=59 // pred_check
          %p1084 = pneg %p155
        $region62: #{tpu_custom_call.1} parent=59 // pred_check_branch
          %1086 = sbr.rel (%p1084) target = $region64
        $region63: #{tpu_custom_call.1} parent=59 // pred_region
          %s1087 = sand.u32 %s140, 1
          %s1088 = scalar_lea.sflag [#allocation4], %s1087
          %s1089 = sand.u32 %s140, 1
          %s1090 = smul.addr %s1089, 8
          %s1091 = scalar_lea.vmem [#allocation10], %s1090
          %1092 = dma.done %s1088, 128
        $region64: #{tpu_custom_call.1} parent=59 // pred_fallthru
          _
      $region60: #{tpu_custom_call.1} parent=5 // pred_fallthru
        _
    $region6: #{tpu_custom_call.1} parent=1 // loop_footer
      %s26 = sadd.s32 1, %s22
    $region7: #{tpu_custom_call.1} parent=1 // loop_footer_branch
      %21 = sbr.rel target = $region3
    $region8: #{tpu_custom_call.1} parent=1 // loop_exit
      _
    %1093 = vsyncpa [#allocation3], 1
    %s1094 = scalar_lea.sflag [#allocation3], 1
    %1095 = vsyncpa %s1094, 1
    %1096 = vsyncpa [#allocation6], 1
    %s1097 = scalar_lea.sflag [#allocation6], 1
    %1098 = vsyncpa %s1097, 1
    %1099 = vsyncpa [#allocation9], 1
    %s1100 = scalar_lea.sflag [#allocation9], 1
    %1101 = vsyncpa %s1100, 1
    %1102 = vsyncpa [#allocation4], 1
    %s1103 = scalar_lea.sflag [#allocation4], 1
    %1104 = vsyncpa %s1103, 1

</llo_original>
